<compile_context>
chip_gen: v7x
topology: tpu7x:2x2x1
jax: 0.10.0
libtpu: 0.0.40
codegen_flags: <defaults>
</compile_context>

<pallas_src>
import math
from functools import partial

import jax
import jax.numpy as jnp
from jax import lax
from jax.experimental import pallas as pl
from jax.experimental.pallas import tpu as pltpu


# ----------------------------------------------------------------------------
# Fused kernel: gated 1x1 conv (qkv) + multi-head "conv attention", N-tiled.
# ----------------------------------------------------------------------------
def _conv_attn_kernel(w_eff_ref, w_big_ref, bias_ref, x_ref,
                      o_ref, kn_ref, v_ref,
                      gp_ref, sq_ref, sk_ref, rk_ref,
                      *, bt, dim):
    # w_eff_ref : (bt, 3*dim, dim)  per-sample effective conv weight (sigmoid(gate)*W)
    # w_big_ref : (C, C)            per-head attention weight, tiled over samples
    # bias_ref  : (C, C)            0 on sample/head diagonal blocks, -1e30 elsewhere
    # x_ref     : (bt, dim, tn)     flattened NCHW input tile
    # o/kn/v    : (C, tn)           sample-stacked output tiles      (C = bt*dim)
    # gp_ref    : (C, C) scratch    gram accumulator, then softmax'ed attention
    # sq/sk/rk  : (C, 1) scratch    sum(q^2), sum(k^2), rsqrt(sum(k^2))
    f32 = jnp.float32
    ph = pl.program_id(1)
    t = pl.program_id(2)
    C = bt * dim
    eps2 = f32(1e-24)                    # (1e-12)^2 -> matches F.normalize eps

    @pl.when(jnp.logical_and(ph == 0, t == 0))
    def _init():
        gp_ref[...] = jnp.zeros_like(gp_ref)
        sq_ref[...] = jnp.zeros_like(sq_ref)
        sk_ref[...] = jnp.zeros_like(sk_ref)

    @pl.when(ph == 0)
    def _accumulate():
        x3 = x_ref[...].astype(f32)                                   # (bt, dim, tn)
        w = w_eff_ref[...].astype(f32)                                # (bt, 3dim, dim)
        qk = jnp.einsum('bod,bdn->bon', w[:, :2 * dim, :], x3,
                        preferred_element_type=f32)                   # (bt, 2dim, tn)
        tn = qk.shape[-1]
        q2 = qk[:, :dim, :].reshape(C, tn)                            # sample-stacked
        k2 = qk[:, dim:, :].reshape(C, tn)
        # One MXU dot for all samples/heads; off-block entries masked later.
        gp_ref[...] += jnp.einsum('cn,dn->cd', q2, k2,
                                  preferred_element_type=f32)         # (C, C)
        sq_ref[...] += jnp.sum(q2 * q2, axis=-1, keepdims=True)       # (C, 1)
        sk_ref[...] += jnp.sum(k2 * k2, axis=-1, keepdims=True)       # (C, 1)

    @pl.when(jnp.logical_and(ph == 1, t == 0))
    def _finalize():
        # L2-normalization factors: F.normalize == x / max(||x||, eps).
        rq = lax.rsqrt(jnp.maximum(sq_ref[...], eps2))                # (C, 1)
        rk = lax.rsqrt(jnp.maximum(sk_ref[...], eps2))                # (C, 1)
        rk_ref[...] = rk
        # Scale gram rows by rq (broadcast) and columns by rk via G @ diag(rk):
        # avoids any (C,1)->(1,C) relayout; the extra C^3 matmul is negligible.
        rows = lax.broadcasted_iota(jnp.int32, (C, C), 0)
        cols = lax.broadcasted_iota(jnp.int32, (C, C), 1)
        diag_rk = jnp.where(rows == cols, rk, f32(0.0))               # (C, C)
        s = jnp.dot(rq * gp_ref[...], diag_rk, preferred_element_type=f32)
        # Per-head attention weight + additive mask, fused multiply-add.
        s = s * w_big_ref[...] + bias_ref[...]
        s = s - jnp.max(s, axis=-1, keepdims=True)
        p = jnp.exp(s)                                                # off-block -> exact 0
        p = p / jnp.sum(p, axis=-1, keepdims=True)                    # exact divide
        gp_ref[...] = p                                               # reuse gram scratch

    @pl.when(ph == 1)
    def _emit():
        x3 = x_ref[...].astype(f32)                                   # (bt, dim, tn)
        w = w_eff_ref[...].astype(f32)
        kv = jnp.einsum('bod,bdn->bon', w[:, dim:, :], x3,
                        preferred_element_type=f32)                   # (bt, 2dim, tn)
        tn = kv.shape[-1]
        k2 = kv[:, :dim, :].reshape(C, tn)
        v2 = kv[:, dim:, :].reshape(C, tn)
        kn_ref[...] = (k2 * rk_ref[...]).astype(kn_ref.dtype)
        v_ref[...] = v2.astype(v_ref.dtype)
        # p is exactly zero off the per-sample / per-head blocks -> one stacked dot.
        o_ref[...] = jnp.dot(gp_ref[...], v2,
                             preferred_element_type=f32).astype(o_ref.dtype)


# ----------------------------------------------------------------------------
# Wrapper helpers
# ----------------------------------------------------------------------------
def _gate_effective_weight(x_flat, params):
    """Conv2d_CG gating prelude (scalar-sized MLPs, plain XLA) -> per-sample
    effective 1x1 conv weight: w_eff[b] = sigmoid(gate[b]) * weight_conv."""
    b, c, _ = x_flat.shape
    oc = params['weight_conv'].shape[0]
    g = 8 if (c // 8) else c
    gl = jnp.max(x_flat, axis=-1)                       # AdaptiveMaxPool2d((1,1))
    ce_out = gl * params['ce_w'][0, 0]                  # Linear(1, 1, bias=False)
    gate_c = jnp.maximum(ce_out, 0.0) * params['gd_w'][0, 0]            # gd(relu(ce))
    t = jnp.maximum(ce_out, 0.0).reshape(b, c // g, g) @ params['ci_w'].T
    gate_o = jnp.maximum(t.reshape(b, oc), 0.0) * params['gd2_w'][0, 0]  # gd2(relu(ci))
    gate = jax.nn.sigmoid(gate_o[:, :, None] + gate_c[:, None, :])       # (b, oc, c)
    wconv = params['weight_conv'].reshape(oc, c)
    return (gate * wconv[None]).astype(jnp.float32)                      # (b, oc, c)


def _choose_tiles(b, dim, n, vmem_budget):
    """Pick (samples per block, N tile) under a VMEM budget.

    Bt is capped at b // 2 so the leading 'parallel' axis has >= 2 steps (v7x has
    2 TensorCores) and at 8 (stacked C = 256 matches the v6e/v7x 256x256 MXU)."""
    bt_cap = max(1, min(8, b // 2)) if b > 1 else 1
    bt_cands = [d for d in range(bt_cap, 0, -1) if b % d == 0]
    tn_cands = [t for t in range(128, n + 1, 128) if n % t == 0][::-1]
    if not tn_cands:
        tn_cands = [n]

    def est_bytes(bt, tn):
        C = bt * dim
        blk = bt * dim * tn * 4                 # one full-size f32 block
        stream = 2 * (1 + 3) * blk              # x + 3 outputs, double-buffered
        temps = 4 * blk                         # in-kernel qk/kv/q2/k2/v2 temporaries
        consts = 5 * C * C * 4                  # w_big + bias (x2 buffers) + gram scratch
        wts = 6 * bt * dim * dim * 4            # per-sample conv weights (x2 buffers)
        return stream + temps + consts + wts

    for tn in tn_cands:                         # prefer the largest lane-dense N tile
        for bt in bt_cands:                     # then as many samples as fit
            if est_bytes(bt, tn) <= vmem_budget:
                return bt, tn
    return bt_cands[-1], tn_cands[-1]


# ----------------------------------------------------------------------------
# Forward pass (ConvAttention with k1=None, return_x=False)
# ----------------------------------------------------------------------------
def conv_attention_forward(x, params, num_heads):
    b, c, h, w = x.shape
    dim = c
    n = h * w
    hd = dim // num_heads
    assert dim % num_heads == 0

    x3 = x.reshape(b, dim, n)

    # Gating (scalar MLPs) + effective per-sample conv weight, precomputed in XLA.
    w_eff = _gate_effective_weight(x3, params)                       # (b, 3*dim, dim)

    # VMEM budget / tile selection (v7x: 64 MiB physical, 32 MiB scoped default).
    phys_vmem = 64 * 1024 * 1024
    try:
        phys_vmem = int(pltpu.get_tpu_info().vmem_capacity_bytes)
    except Exception:
        pass
    vmem_limit = min(int(phys_vmem * 0.75), 100 * 1024 * 1024)
    bt, tn = _choose_tiles(b, dim, n, int(vmem_limit * 0.8))
    C = bt * dim

    # Per-head attention weight expanded block-diagonally to (dim, dim), tiled to
    # the sample-stacked (C, C).  The additive bias kills all off-sample / off-head
    # blocks (exp underflows to exactly 0), so the tiling is harmless.
    eye_h = jnp.eye(num_heads, dtype=jnp.float32)
    w_bd = jnp.einsum('hg,hij->higj', eye_h,
                      params['attn_weight'].astype(jnp.float32)).reshape(dim, dim)
    w_big = jnp.tile(w_bd, (bt, bt))                                 # (C, C)
    blk_id = jnp.arange(C, dtype=jnp.int32) // hd                    # sample+head block id
    bias_big = jnp.where(blk_id[:, None] == blk_id[None, :],
                         0.0, -1e30).astype(jnp.float32)             # (C, C)

    grid = (b // bt, 2, n // tn)
    kernel = partial(_conv_attn_kernel, bt=bt, dim=dim)

    out2d, kn2d, v2d = pl.pallas_call(
        kernel,
        out_shape=(
            jax.ShapeDtypeStruct((b * dim, n), x.dtype),
            jax.ShapeDtypeStruct((b * dim, n), x.dtype),
            jax.ShapeDtypeStruct((b * dim, n), x.dtype),
        ),
        grid_spec=pltpu.PrefetchScalarGridSpec(
            num_scalar_prefetch=0,
            grid=grid,
            in_specs=[
                pl.BlockSpec((bt, 3 * dim, dim), lambda i, ph, t: (i, 0, 0)),
                pl.BlockSpec((C, C), lambda i, ph, t: (0, 0)),
                pl.BlockSpec((C, C), lambda i, ph, t: (0, 0)),
                pl.BlockSpec((bt, dim, tn), lambda i, ph, t: (i, 0, t)),
            ],
            out_specs=(
                # During phase 0 the block index stays (i, 0): nothing is written
                # and nothing is written back until phase 1 fills it.
                pl.BlockSpec((C, tn), lambda i, ph, t: (i, ph * t)),
                pl.BlockSpec((C, tn), lambda i, ph, t: (i, ph * t)),
                pl.BlockSpec((C, tn), lambda i, ph, t: (i, ph * t)),
            ),
            scratch_shapes=[
                pltpu.VMEM((C, C), jnp.float32),    # gram, then softmax'ed attention
                pltpu.VMEM((C, 1), jnp.float32),    # sum(q^2)
                pltpu.VMEM((C, 1), jnp.float32),    # sum(k^2)
                pltpu.VMEM((C, 1), jnp.float32),    # rsqrt(sum(k^2)) for kn
            ],
        ),
        compiler_params=pltpu.CompilerParams(
            dimension_semantics=("parallel", "arbitrary", "arbitrary"),
            vmem_limit_bytes=vmem_limit,
        ),
    )(w_eff, w_big, bias_big, x3)

    # rearrange 'b (head c) (h w) -> ...' : contiguous, free reshapes.
    x_out = out2d.reshape(b, dim, h, w)
    k_out = kn2d.reshape(b, num_heads, hd, n)
    v_out = v2d.reshape(b, num_heads, hd, n)
    return x_out, k_out, v_out


# ----------------------------------------------------------------------------
# Pure-JAX reference (same forward semantics) for the self-check
# ----------------------------------------------------------------------------
def conv_attention_reference(x, params, num_heads):
    b, c, h, w = x.shape
    n = h * w
    hd = c // num_heads
    x3 = x.reshape(b, c, n)
    w_eff = _gate_effective_weight(x3, params)
    qkv = jnp.einsum('boc,bcn->bon', w_eff, x3.astype(jnp.float32))
    q = qkv[:, :c].reshape(b, num_heads, hd, n)
    k = qkv[:, c:2 * c].reshape(b, num_heads, hd, n)
    v = qkv[:, 2 * c:].reshape(b, num_heads, hd, n)
    qn = q / jnp.maximum(jnp.sqrt(jnp.sum(q * q, -1, keepdims=True)), 1e-12)
    kn = k / jnp.maximum(jnp.sqrt(jnp.sum(k * k, -1, keepdims=True)), 1e-12)
    attn = jnp.einsum('bhin,bhjn->bhij', qn, kn) * params['attn_weight'][None]
    attn = jax.nn.softmax(attn, axis=-1)
    out = jnp.einsum('bhij,bhjn->bhin', attn, v).reshape(b, c, h, w)
    return out.astype(x.dtype), kn.astype(x.dtype), v.astype(x.dtype)


# ----------------------------------------------------------------------------
# Deterministic parameter init (mirrors the PyTorch __init__ shapes)
# ----------------------------------------------------------------------------
def init_params(key, dim, num_heads):
    hd = dim // num_heads
    oc = 3 * dim
    g = 8 if (dim // 8) else dim
    m = oc // (dim // g)                       # ci out_features
    ks = jax.random.split(key, 6)

    attn_weight = jax.random.normal(ks[0], (num_heads, hd, hd), jnp.float32) * 0.001
    # kaiming_normal_ on (oc, dim, 1, 1): fan_in = dim, std = sqrt(2/dim)
    weight_conv = jax.random.normal(ks[1], (oc, dim, 1, 1), jnp.float32) * math.sqrt(2.0 / dim)

    def lin(k, out_f, in_f):
        bound = 1.0 / math.sqrt(in_f)
        return jax.random.uniform(k, (out_f, in_f), jnp.float32, -bound, bound)

    return dict(
        attn_weight=attn_weight,
        weight_conv=weight_conv,
        ce_w=lin(ks[2], 1, 1),       # Linear(ws*ws=1 -> num_lat=1, bias=False)
        gd_w=lin(ks[3], 1, 1),       # Linear(num_lat=1 -> ks*ks=1, bias=False)
        gd2_w=lin(ks[4], 1, 1),      # Linear(num_lat=1 -> ks*ks=1, bias=False)
        ci_w=lin(ks[5], m, g),       # Linear(g -> oc // (dim // g), bias=False)
    )


if __name__ == "__main__":
    key = jax.random.PRNGKey(0)
    dim, num_heads = 32, 8
    b, h, w = 2, 16, 16

    kx, kp = jax.random.split(key)
    x = jax.random.normal(kx, (b, dim, h, w), jnp.float32)
    params = init_params(kp, dim, num_heads)

    fwd = jax.jit(partial(conv_attention_forward, num_heads=num_heads))
    x_out, k_out, v_out = fwd(x, params)
    jax.block_until_ready((x_out, k_out, v_out))

    assert x_out.shape == (b, dim, h, w)
    assert k_out.shape == (b, num_heads, dim // num_heads, h * w)
    assert v_out.shape == (b, num_heads, dim // num_heads, h * w)
    assert bool(jnp.all(jnp.isfinite(x_out)))

    # Cross-check the fused kernel against a pure-JAX reference of the same math.
    xr, kr, vr = jax.jit(partial(conv_attention_reference, num_heads=num_heads))(x, params)
    for got, ref in ((x_out, xr), (k_out, kr), (v_out, vr)):
        err = float(jnp.max(jnp.abs(got - ref)))
        assert err < 5e-3, err

    print("KERNEL_OK")
</pallas_src>

<mosaic_0001>
module attributes {stable_mosaic.version = 11 : i64} {
  func.func @_conv_attn_kernel(%arg0: i32, %arg1: i32, %arg2: i32, %arg3: memref<1x96x32xf32, #tpu.memory_space<vmem>>, %arg4: memref<32x32xf32, #tpu.memory_space<vmem>>, %arg5: memref<32x32xf32, #tpu.memory_space<vmem>>, %arg6: memref<1x32x256xf32, #tpu.memory_space<vmem>>, %arg7: memref<32x256xf32, #tpu.memory_space<vmem>>, %arg8: memref<32x256xf32, #tpu.memory_space<vmem>>, %arg9: memref<32x256xf32, #tpu.memory_space<vmem>>, %arg10: memref<32x32xf32, #tpu.memory_space<vmem>>, %arg11: memref<32x1xf32, #tpu.memory_space<vmem>>, %arg12: memref<32x1xf32, #tpu.memory_space<vmem>>, %arg13: memref<32x1xf32, #tpu.memory_space<vmem>>) attributes {dimension_semantics = [#tpu.dimension_semantics<parallel>, #tpu.dimension_semantics<arbitrary>, #tpu.dimension_semantics<arbitrary>], iteration_bounds = array<i64: 2, 2, 1>, scalar_prefetch = 0 : i64, scratch_operands = 4 : i64, tpu.core_type = #tpu.core_type<tc>, window_params = [{transform_indices = @transform_0, window_bounds = array<i64: 1, 96, 32>}, {pipeline_mode = #tpu.pipeline_mode<synchronous>, transform_indices = @transform_1, window_bounds = array<i64: 32, 32>}, {pipeline_mode = #tpu.pipeline_mode<synchronous>, transform_indices = @transform_2, window_bounds = array<i64: 32, 32>}, {transform_indices = @transform_3, window_bounds = array<i64: 1, 32, 256>}, {transform_indices = @transform_4, window_bounds = array<i64: 32, 256>}, {transform_indices = @transform_5, window_bounds = array<i64: 32, 256>}, {transform_indices = @transform_6, window_bounds = array<i64: 32, 256>}]} {
    %c0_i32 = arith.constant 0 : i32
    %0 = arith.cmpi eq, %arg1, %c0_i32 : i32
    %c0_i32_0 = arith.constant 0 : i32
    %1 = arith.cmpi eq, %arg2, %c0_i32_0 : i32
    %2 = arith.andi %0, %1 : i1
    %3 = arith.extui %2 : i1 to i32
    %c0_i32_1 = arith.constant 0 : i32
    %4 = arith.cmpi ne, %3, %c0_i32_1 : i32
    scf.if %4 {
      %cst_8 = arith.constant 0.000000e+00 : f32
      %16 = vector.broadcast %cst_8 : f32 to vector<32x32xf32>
      %c0 = arith.constant 0 : index
      %c0_9 = arith.constant 0 : index
      %17 = vector.load %arg10[%c0, %c0_9] : memref<32x32xf32, #tpu.memory_space<vmem>>, vector<32x32xf32>
      tpu.vector_store %arg10[%c0, %c0_9], %16 {strides = array<i32>} : memref<32x32xf32, #tpu.memory_space<vmem>>, vector<32x32xf32>,
      %cst_10 = arith.constant 0.000000e+00 : f32
      %18 = vector.broadcast %cst_10 : f32 to vector<32x1xf32>
      %c0_11 = arith.constant 0 : index
      %c0_12 = arith.constant 0 : index
      %19 = vector.load %arg11[%c0_11, %c0_12] : memref<32x1xf32, #tpu.memory_space<vmem>>, vector<32x1xf32>
      tpu.vector_store %arg11[%c0_11, %c0_12], %18 {strides = array<i32>} : memref<32x1xf32, #tpu.memory_space<vmem>>, vector<32x1xf32>,
      %cst_13 = arith.constant 0.000000e+00 : f32
      %20 = vector.broadcast %cst_13 : f32 to vector<32x1xf32>
      %c0_14 = arith.constant 0 : index
      %c0_15 = arith.constant 0 : index
      %21 = vector.load %arg12[%c0_14, %c0_15] : memref<32x1xf32, #tpu.memory_space<vmem>>, vector<32x1xf32>
      tpu.vector_store %arg12[%c0_14, %c0_15], %20 {strides = array<i32>} : memref<32x1xf32, #tpu.memory_space<vmem>>, vector<32x1xf32>,
    } else {
    }
    %c0_i32_2 = arith.constant 0 : i32
    %5 = arith.cmpi eq, %arg1, %c0_i32_2 : i32
    %6 = arith.extui %5 : i1 to i32
    %c0_i32_3 = arith.constant 0 : i32
    %7 = arith.cmpi ne, %6, %c0_i32_3 : i32
    scf.if %7 {
      %c0 = arith.constant 0 : index
      %c0_8 = arith.constant 0 : index
      %c0_9 = arith.constant 0 : index
      %16 = vector.load %arg6[%c0, %c0_8, %c0_9] : memref<1x32x256xf32, #tpu.memory_space<vmem>>, vector<1x32x256xf32>
      %c0_10 = arith.constant 0 : index
      %c0_11 = arith.constant 0 : index
      %c0_12 = arith.constant 0 : index
      %17 = vector.load %arg3[%c0_10, %c0_11, %c0_12] : memref<1x96x32xf32, #tpu.memory_space<vmem>>, vector<1x96x32xf32>
      %18 = vector.extract_strided_slice %17 {offsets = [0, 0, 0], sizes = [1, 64, 32], strides = [1, 1, 1]} : vector<1x96x32xf32> to vector<1x64x32xf32>
      "tpu.trace_start"() <{level = 10 : i32, message = "bod,bdn->bon"}> : () -> ()
      %cst_13 = arith.constant dense<0.000000e+00> : vector<1x64x256xf32>
      %19 = tpu.matmul %18, %16, %cst_13 {dimension_numbers = #tpu.dot_dimension_numbers<[2], [1], [1], [2], [0, 0, 0, 1, 1, 2], [0], [0]>} : vector<1x64x32xf32>, vector<1x32x256xf32>, vector<1x64x256xf32> -> vector<1x64x256xf32>
      "tpu.trace_stop"() : () -> ()
      %20 = vector.extract_strided_slice %19 {offsets = [0, 0, 0], sizes = [1, 32, 256], strides = [1, 1, 1]} : vector<1x64x256xf32> to vector<1x32x256xf32>
      %21 = vector.shape_cast %20 : vector<1x32x256xf32> to vector<32x256xf32>
      %22 = vector.extract_strided_slice %19 {offsets = [0, 32, 0], sizes = [1, 32, 256], strides = [1, 1, 1]} : vector<1x64x256xf32> to vector<1x32x256xf32>
      %23 = vector.shape_cast %22 : vector<1x32x256xf32> to vector<32x256xf32>
      %c0_14 = arith.constant 0 : index
      %c0_15 = arith.constant 0 : index
      %24 = vector.load %arg10[%c0_14, %c0_15] : memref<32x32xf32, #tpu.memory_space<vmem>>, vector<32x32xf32>
      "tpu.trace_start"() <{level = 10 : i32, message = "cn,dn->cd"}> : () -> ()
      %cst_16 = arith.constant dense<0.000000e+00> : vector<32x32xf32>
      %25 = tpu.matmul %21, %23, %cst_16 {dimension_numbers = #tpu.dot_dimension_numbers<[1], [1], [0], [0], [0, 0, 1, 0], [], []>} : vector<32x256xf32>, vector<32x256xf32>, vector<32x32xf32> -> vector<32x32xf32>
      "tpu.trace_stop"() : () -> ()
      %26 = arith.addf %24, %25 : vector<32x32xf32>
      %c0_17 = arith.constant 0 : index
      %c0_18 = arith.constant 0 : index
      %27 = vector.load %arg10[%c0_17, %c0_18] : memref<32x32xf32, #tpu.memory_space<vmem>>, vector<32x32xf32>
      tpu.vector_store %arg10[%c0_17, %c0_18], %26 {strides = array<i32>} : memref<32x32xf32, #tpu.memory_space<vmem>>, vector<32x32xf32>,
      %c0_19 = arith.constant 0 : index
      %c0_20 = arith.constant 0 : index
      %28 = vector.load %arg11[%c0_19, %c0_20] : memref<32x1xf32, #tpu.memory_space<vmem>>, vector<32x1xf32>
      %29 = arith.mulf %21, %21 : vector<32x256xf32>
      %cst_21 = arith.constant dense<0.000000e+00> : vector<32xf32>
      %30 = vector.multi_reduction <add>, %29, %cst_21 [1] : vector<32x256xf32> to vector<32xf32>
      %31 = vector.shape_cast %30 : vector<32xf32> to vector<32x1xf32>
      %32 = arith.addf %28, %31 : vector<32x1xf32>
      %c0_22 = arith.constant 0 : index
      %c0_23 = arith.constant 0 : index
      %33 = vector.load %arg11[%c0_22, %c0_23] : memref<32x1xf32, #tpu.memory_space<vmem>>, vector<32x1xf32>
      tpu.vector_store %arg11[%c0_22, %c0_23], %32 {strides = array<i32>} : memref<32x1xf32, #tpu.memory_space<vmem>>, vector<32x1xf32>,
      %c0_24 = arith.constant 0 : index
      %c0_25 = arith.constant 0 : index
      %34 = vector.load %arg12[%c0_24, %c0_25] : memref<32x1xf32, #tpu.memory_space<vmem>>, vector<32x1xf32>
      %35 = arith.mulf %23, %23 : vector<32x256xf32>
      %cst_26 = arith.constant dense<0.000000e+00> : vector<32xf32>
      %36 = vector.multi_reduction <add>, %35, %cst_26 [1] : vector<32x256xf32> to vector<32xf32>
      %37 = vector.shape_cast %36 : vector<32xf32> to vector<32x1xf32>
      %38 = arith.addf %34, %37 : vector<32x1xf32>
      %c0_27 = arith.constant 0 : index
      %c0_28 = arith.constant 0 : index
      %39 = vector.load %arg12[%c0_27, %c0_28] : memref<32x1xf32, #tpu.memory_space<vmem>>, vector<32x1xf32>
      tpu.vector_store %arg12[%c0_27, %c0_28], %38 {strides = array<i32>} : memref<32x1xf32, #tpu.memory_space<vmem>>, vector<32x1xf32>,
    } else {
    }
    %c1_i32 = arith.constant 1 : i32
    %8 = arith.cmpi eq, %arg1, %c1_i32 : i32
    %c0_i32_4 = arith.constant 0 : i32
    %9 = arith.cmpi eq, %arg2, %c0_i32_4 : i32
    %10 = arith.andi %8, %9 : i1
    %11 = arith.extui %10 : i1 to i32
    %cst = arith.constant 1.000000e-24 : f32
    %c0_i32_5 = arith.constant 0 : i32
    %12 = arith.cmpi ne, %11, %c0_i32_5 : i32
    scf.if %12 {
      %c0 = arith.constant 0 : index
      %c0_8 = arith.constant 0 : index
      %16 = vector.load %arg11[%c0, %c0_8] : memref<32x1xf32, #tpu.memory_space<vmem>>, vector<32x1xf32>
      %17 = vector.broadcast %cst : f32 to vector<32x1xf32>
      %18 = arith.maximumf %16, %17 : vector<32x1xf32>
      %19 = math.rsqrt %18 : vector<32x1xf32>
      %c0_9 = arith.constant 0 : index
      %c0_10 = arith.constant 0 : index
      %20 = vector.load %arg12[%c0_9, %c0_10] : memref<32x1xf32, #tpu.memory_space<vmem>>, vector<32x1xf32>
      %21 = vector.broadcast %cst : f32 to vector<32x1xf32>
      %22 = arith.maximumf %20, %21 : vector<32x1xf32>
      %23 = math.rsqrt %22 : vector<32x1xf32>
      %c0_11 = arith.constant 0 : index
      %c0_12 = arith.constant 0 : index
      %24 = vector.load %arg13[%c0_11, %c0_12] : memref<32x1xf32, #tpu.memory_space<vmem>>, vector<32x1xf32>
      tpu.vector_store %arg13[%c0_11, %c0_12], %23 {strides = array<i32>} : memref<32x1xf32, #tpu.memory_space<vmem>>, vector<32x1xf32>,
      %25 = tpu.iota {dimensions = array<i32: 0>} : vector<32x32xi32>
      %26 = tpu.iota {dimensions = array<i32: 1>} : vector<32x32xi32>
      %27 = arith.cmpi eq, %25, %26 : vector<32x32xi32>
      %cst_13 = arith.constant 0.000000e+00 : f32
      %28 = vector.shape_cast %23 : vector<32x1xf32> to vector<32x1xf32>
      %29 = vector.broadcast %28 : vector<32x1xf32> to vector<32x32xf32>
      %30 = vector.broadcast %cst_13 : f32 to vector<32x32xf32>
      %31 = arith.select %27, %29, %30 : vector<32x32xi1>, vector<32x32xf32>
      %c0_14 = arith.constant 0 : index
      %c0_15 = arith.constant 0 : index
      %32 = vector.load %arg10[%c0_14, %c0_15] : memref<32x32xf32, #tpu.memory_space<vmem>>, vector<32x32xf32>
      %33 = vector.broadcast %19 : vector<32x1xf32> to vector<32x32xf32>
      %34 = arith.mulf %33, %32 : vector<32x32xf32>
      %cst_16 = arith.constant dense<0.000000e+00> : vector<32x32xf32>
      %35 = tpu.matmul %34, %31, %cst_16 {dimension_numbers = #tpu.dot_dimension_numbers<[1], [0], [0], [1], [0, 0, 1, 1], [], []>} : vector<32x32xf32>, vector<32x32xf32>, vector<32x32xf32> -> vector<32x32xf32>
      %c0_17 = arith.constant 0 : index
      %c0_18 = arith.constant 0 : index
      %36 = vector.load %arg4[%c0_17, %c0_18] : memref<32x32xf32, #tpu.memory_space<vmem>>, vector<32x32xf32>
      %37 = arith.mulf %35, %36 : vector<32x32xf32>
      %c0_19 = arith.constant 0 : index
      %c0_20 = arith.constant 0 : index
      %38 = vector.load %arg5[%c0_19, %c0_20] : memref<32x32xf32, #tpu.memory_space<vmem>>, vector<32x32xf32>
      %39 = arith.addf %37, %38 : vector<32x32xf32>
      %cst_21 = arith.constant dense<0xFF800000> : vector<32xf32>
      %40 = vector.multi_reduction <maximumf>, %39, %cst_21 [1] : vector<32x32xf32> to vector<32xf32>
      %41 = vector.shape_cast %40 : vector<32xf32> to vector<32x1xf32>
      %42 = vector.broadcast %41 : vector<32x1xf32> to vector<32x32xf32>
      %43 = arith.subf %39, %42 : vector<32x32xf32>
      %44 = math.exp %43 : vector<32x32xf32>
      %cst_22 = arith.constant dense<0.000000e+00> : vector<32xf32>
      %45 = vector.multi_reduction <add>, %44, %cst_22 [1] : vector<32x32xf32> to vector<32xf32>
      %46 = vector.shape_cast %45 : vector<32xf32> to vector<32x1xf32>
      %47 = vector.broadcast %46 : vector<32x1xf32> to vector<32x32xf32>
      %48 = arith.divf %44, %47 : vector<32x32xf32>
      %c0_23 = arith.constant 0 : index
      %c0_24 = arith.constant 0 : index
      %49 = vector.load %arg10[%c0_23, %c0_24] : memref<32x32xf32, #tpu.memory_space<vmem>>, vector<32x32xf32>
      tpu.vector_store %arg10[%c0_23, %c0_24], %48 {strides = array<i32>} : memref<32x32xf32, #tpu.memory_space<vmem>>, vector<32x32xf32>,
    } else {
    }
    %c1_i32_6 = arith.constant 1 : i32
    %13 = arith.cmpi eq, %arg1, %c1_i32_6 : i32
    %14 = arith.extui %13 : i1 to i32
    %c0_i32_7 = arith.constant 0 : i32
    %15 = arith.cmpi ne, %14, %c0_i32_7 : i32
    scf.if %15 {
      %c0 = arith.constant 0 : index
      %c0_8 = arith.constant 0 : index
      %c0_9 = arith.constant 0 : index
      %16 = vector.load %arg6[%c0, %c0_8, %c0_9] : memref<1x32x256xf32, #tpu.memory_space<vmem>>, vector<1x32x256xf32>
      %c0_10 = arith.constant 0 : index
      %c0_11 = arith.constant 0 : index
      %c0_12 = arith.constant 0 : index
      %17 = vector.load %arg3[%c0_10, %c0_11, %c0_12] : memref<1x96x32xf32, #tpu.memory_space<vmem>>, vector<1x96x32xf32>
      %18 = vector.extract_strided_slice %17 {offsets = [0, 32, 0], sizes = [1, 64, 32], strides = [1, 1, 1]} : vector<1x96x32xf32> to vector<1x64x32xf32>
      "tpu.trace_start"() <{level = 10 : i32, message = "bod,bdn->bon"}> : () -> ()
      %cst_13 = arith.constant dense<0.000000e+00> : vector<1x64x256xf32>
      %19 = tpu.matmul %18, %16, %cst_13 {dimension_numbers = #tpu.dot_dimension_numbers<[2], [1], [1], [2], [0, 0, 0, 1, 1, 2], [0], [0]>} : vector<1x64x32xf32>, vector<1x32x256xf32>, vector<1x64x256xf32> -> vector<1x64x256xf32>
      "tpu.trace_stop"() : () -> ()
      %20 = vector.extract_strided_slice %19 {offsets = [0, 0, 0], sizes = [1, 32, 256], strides = [1, 1, 1]} : vector<1x64x256xf32> to vector<1x32x256xf32>
      %21 = vector.shape_cast %20 : vector<1x32x256xf32> to vector<32x256xf32>
      %22 = vector.extract_strided_slice %19 {offsets = [0, 32, 0], sizes = [1, 32, 256], strides = [1, 1, 1]} : vector<1x64x256xf32> to vector<1x32x256xf32>
      %23 = vector.shape_cast %22 : vector<1x32x256xf32> to vector<32x256xf32>
      %c0_14 = arith.constant 0 : index
      %c0_15 = arith.constant 0 : index
      %24 = vector.load %arg13[%c0_14, %c0_15] : memref<32x1xf32, #tpu.memory_space<vmem>>, vector<32x1xf32>
      %25 = vector.broadcast %24 : vector<32x1xf32> to vector<32x256xf32>
      %26 = arith.mulf %21, %25 : vector<32x256xf32>
      %c0_16 = arith.constant 0 : index
      %c0_17 = arith.constant 0 : index
      %27 = vector.load %arg8[%c0_16, %c0_17] : memref<32x256xf32, #tpu.memory_space<vmem>>, vector<32x256xf32>
      tpu.vector_store %arg8[%c0_16, %c0_17], %26 {strides = array<i32>} : memref<32x256xf32, #tpu.memory_space<vmem>>, vector<32x256xf32>,
      %c0_18 = arith.constant 0 : index
      %c0_19 = arith.constant 0 : index
      %28 = vector.load %arg9[%c0_18, %c0_19] : memref<32x256xf32, #tpu.memory_space<vmem>>, vector<32x256xf32>
      tpu.vector_store %arg9[%c0_18, %c0_19], %23 {strides = array<i32>} : memref<32x256xf32, #tpu.memory_space<vmem>>, vector<32x256xf32>,
      %c0_20 = arith.constant 0 : index
      %c0_21 = arith.constant 0 : index
      %29 = vector.load %arg10[%c0_20, %c0_21] : memref<32x32xf32, #tpu.memory_space<vmem>>, vector<32x32xf32>
      %cst_22 = arith.constant dense<0.000000e+00> : vector<32x256xf32>
      %30 = tpu.matmul %29, %23, %cst_22 {dimension_numbers = #tpu.dot_dimension_numbers<[1], [0], [0], [1], [0, 0, 1, 1], [], []>} : vector<32x32xf32>, vector<32x256xf32>, vector<32x256xf32> -> vector<32x256xf32>
      %c0_23 = arith.constant 0 : index
      %c0_24 = arith.constant 0 : index
      %31 = vector.load %arg7[%c0_23, %c0_24] : memref<32x256xf32, #tpu.memory_space<vmem>>, vector<32x256xf32>
      tpu.vector_store %arg7[%c0_23, %c0_24], %30 {strides = array<i32>} : memref<32x256xf32, #tpu.memory_space<vmem>>, vector<32x256xf32>,
    } else {
    }
    return
  }
  func.func @transform_0(%arg0: i32, %arg1: i32, %arg2: i32) -> (i32, i32, i32) {
    %c0_i32 = arith.constant 0 : i32
    %c0_i32_0 = arith.constant 0 : i32
    %c0_i32_1 = arith.constant 0 : i32
    return %arg0, %c0_i32, %c0_i32_0 : i32, i32, i32
  }
  func.func @transform_1(%arg0: i32, %arg1: i32, %arg2: i32) -> (i32, i32) {
    %c0_i32 = arith.constant 0 : i32
    %c0_i32_0 = arith.constant 0 : i32
    %c0_i32_1 = arith.constant 0 : i32
    return %c0_i32, %c0_i32_0 : i32, i32
  }
  func.func @transform_2(%arg0: i32, %arg1: i32, %arg2: i32) -> (i32, i32) {
    %c0_i32 = arith.constant 0 : i32
    %c0_i32_0 = arith.constant 0 : i32
    %c0_i32_1 = arith.constant 0 : i32
    return %c0_i32, %c0_i32_0 : i32, i32
  }
  func.func @transform_3(%arg0: i32, %arg1: i32, %arg2: i32) -> (i32, i32, i32) {
    %c0_i32 = arith.constant 0 : i32
    %c0_i32_0 = arith.constant 0 : i32
    return %arg0, %c0_i32, %arg2 : i32, i32, i32
  }
  func.func @transform_4(%arg0: i32, %arg1: i32, %arg2: i32) -> (i32, i32) {
    %0 = arith.muli %arg1, %arg2 : i32
    %c0_i32 = arith.constant 0 : i32
    return %arg0, %0 : i32, i32
  }
  func.func @transform_5(%arg0: i32, %arg1: i32, %arg2: i32) -> (i32, i32) {
    %0 = arith.muli %arg1, %arg2 : i32
    %c0_i32 = arith.constant 0 : i32
    return %arg0, %0 : i32, i32
  }
  func.func @transform_6(%arg0: i32, %arg1: i32, %arg2: i32) -> (i32, i32) {
    %0 = arith.muli %arg1, %arg2 : i32
    %c0_i32 = arith.constant 0 : i32
    return %arg0, %0 : i32, i32
  }
}

</mosaic_0001>

<llo_original>
// kernel: conv_attention_forward.1
$region0: #{conv_attention_forward.1}
  #allocation0 [shape = 'u32[]', space=smem, size = 0x4, offset = 0x4, fixed_abs, tag = 'smem constant byte address 0x4 - core index']
  #allocation1 [shape = 'u32[144,128]{1,0:T(1,128)}', space=vmem, size = 0x12000, scoped, tag = 'internal scratch']
  #allocation2 [shape = 'f32[32,32]{1,0:T(8,128)}', space=vmem, size = 0x4000, scoped, tag = 'scratch operand']
  #allocation3 [shape = 'f32[32,1]{1,0:T(8,128)}', space=vmem, size = 0x4000, scoped, tag = 'scratch operand']
  #allocation4 [shape = 'f32[32,1]{1,0:T(8,128)}', space=vmem, size = 0x4000, scoped, tag = 'scratch operand']
  #allocation5 [shape = 'f32[32,1]{1,0:T(8,128)}', space=vmem, size = 0x4000, scoped, tag = 'scratch operand']
  %s0 = inlined_call_operand.vmem [shape: f32[2,96,32], index: 0, kind: input, shape index: {}]
  %s1 = inlined_call_operand.vmem [shape: f32[32,32], index: 1, kind: input, shape index: {}]
  %s2 = inlined_call_operand.vmem [shape: f32[32,32], index: 2, kind: input, shape index: {}]
  %s3 = inlined_call_operand.vmem [shape: f32[2,32,256], index: 3, kind: input, shape index: {}]
  %s4 = inlined_call_operand.vmem [shape: f32[64,256], index: 4, kind: output, shape index: {0}]
  %s5 = inlined_call_operand.vmem [shape: f32[64,256], index: 5, kind: output, shape index: {1}]
  %s6 = inlined_call_operand.vmem [shape: f32[64,256], index: 6, kind: output, shape index: {2}]
  %7 = xla_tuple %s4, %s5, %s6
  %s8 = sld [smem:[#allocation0]]
  $region81: #{conv_attention_forward.1} parent=0
    _
  %s10 = ssub.s32 1, %s8
  %s11 = scalar_select 0, %s10, %s8
  loop: start=0, step=1, limit=6
  $region2: #{conv_attention_forward.1} parent=0 // loop_pre_header
    _
  $region3: #{conv_attention_forward.1} parent=0 // loop_header
    %s13 = sphi 0, %s17
    %p14 = scmp.ge.s32.totalorder %s13, 6
    %s20 = sphi 0, %s39
    %s21 = sphi 0, %s35
    %s22 = sphi 0, %s31
    %s23 = sphi 0, %s20
    %s24 = sphi 0, %s21
    %s25 = sphi 0, %s22
    %s26 = sphi 0, %s23
    %s27 = sphi 0, %s24
    %s28 = sphi 0, %s25
    %s42 = sphi 0, %s44
    %s45 = sphi 0, %s42
    %s46 = sphi 0, %s45
    %s62 = sphi 0, %s46
    %s66 = sphi 0, %s66
    %s68 = sphi 0, %s66
    %s69 = sphi 0, %s68
    %s83 = sphi 0, %s69
    %s87 = sphi 0, %s87
    %s89 = sphi 0, %s87
    %s90 = sphi 0, %s89
    %s104 = sphi 0, %s90
    %s112 = sphi 0, %s114
    %s115 = sphi 0, %s112
    %s116 = sphi 0, %s115
    %s132 = sphi 0, %s116
    %s142 = sphi 0, %s144
    %s145 = sphi 0, %s142
    %s146 = sphi 0, %s145
    %s162 = sphi 0, %s146
    %s172 = sphi 0, %s174
    %s175 = sphi 0, %s172
    %s176 = sphi 0, %s175
    %s192 = sphi 0, %s176
    %s202 = sphi 0, %s204
    %s205 = sphi 0, %s202
    %s206 = sphi 0, %s205
    %s222 = sphi 0, %s206
  $region4: #{conv_attention_forward.1} parent=0 // loop_header_branch
    %16 = sbr.rel (%p14) target = $region8
  $region5: #{conv_attention_forward.1} parent=0 // loop_body
    %s18 = ssub.s32 %s13, 1
    %s19 = ssub.s32 %s13, 2
    %s29 = sadd.s32 1, %s22
    %p30 = scmp.ge.s32.totalorder %s29, 1
    %s31 = scalar_select %p30, 0, %s29
    %s32 = sadd.s32 1, %s21
    %s33 = scalar_select %p30, %s32, %s21
    %p34 = scmp.ge.s32.totalorder %s33, 2
    %s35 = scalar_select %p34, 0, %s33
    %s36 = sadd.s32 1, %s20
    %s37 = scalar_select %p34, %s36, %s20
    %p38 = scmp.ge.s32.totalorder %s37, 2
    %s39 = scalar_select %p38, 0, %s37
    %s40 = ssub.s32 %s20, %s39
    %p41 = scmp.eq.s32.totalorder %s40, 0
    %s43 = sadd.s32 %s42, 1
    %s44 = scalar_select %p41, %s42, %s43
    %p47 = pneg %p41
    %p48 = scmp.eq.s32.totalorder %s13, 3
    %p49 = por %p47, %p48
    %p50 = scmp.ne.s32.totalorder %s42, %s45
    %p51 = scmp.eq.s32.totalorder %s13, 0
    %p52 = por %p50, %p51
    %p53 = scmp.ne.s32.totalorder %s42, %s45
    %p54 = scmp.eq.s32.totalorder %s18, 3
    %p55 = por %p53, %p54
    %p56 = scmp.ne.s32.totalorder %s45, %s46
    %p57 = scmp.eq.s32.totalorder %s18, 0
    %p58 = por %p56, %p57
    %p59 = scmp.ne.s32.totalorder %s45, %s46
    %p60 = scmp.eq.s32.totalorder %s19, 3
    %p61 = por %p59, %p60
    %p63 = scmp.ne.s32.totalorder %s46, %s62
    %p64 = scmp.eq.s32.totalorder %s19, 0
    %p65 = por %p63, %p64
    %s67 = sadd.s32 %s66, 1
    %p70 = scmp.eq.s32.totalorder %s13, 3
    %p71 = scmp.ne.s32.totalorder %s66, %s68
    %p72 = scmp.eq.s32.totalorder %s13, 0
    %p73 = por %p71, %p72
    %p74 = scmp.ne.s32.totalorder %s66, %s68
    %p75 = scmp.eq.s32.totalorder %s18, 3
    %p76 = por %p74, %p75
    %p77 = scmp.ne.s32.totalorder %s68, %s69
    %p78 = scmp.eq.s32.totalorder %s18, 0
    %p79 = por %p77, %p78
    %p80 = scmp.ne.s32.totalorder %s68, %s69
    %p81 = scmp.eq.s32.totalorder %s19, 3
    %p82 = por %p80, %p81
    %p84 = scmp.ne.s32.totalorder %s69, %s83
    %p85 = scmp.eq.s32.totalorder %s19, 0
    %p86 = por %p84, %p85
    %s88 = sadd.s32 %s87, 1
    %p91 = scmp.eq.s32.totalorder %s13, 3
    %p92 = scmp.ne.s32.totalorder %s87, %s89
    %p93 = scmp.eq.s32.totalorder %s13, 0
    %p94 = por %p92, %p93
    %p95 = scmp.ne.s32.totalorder %s87, %s89
    %p96 = scmp.eq.s32.totalorder %s18, 3
    %p97 = por %p95, %p96
    %p98 = scmp.ne.s32.totalorder %s89, %s90
    %p99 = scmp.eq.s32.totalorder %s18, 0
    %p100 = por %p98, %p99
    %p101 = scmp.ne.s32.totalorder %s89, %s90
    %p102 = scmp.eq.s32.totalorder %s19, 3
    %p103 = por %p101, %p102
    %p105 = scmp.ne.s32.totalorder %s90, %s104
    %p106 = scmp.eq.s32.totalorder %s19, 0
    %p107 = por %p105, %p106
    %s108 = ssub.s32 %s20, %s39
    %s109 = ssub.s32 %s22, %s31
    %s110 = sor.u32 %s108, %s109
    %p111 = scmp.eq.s32.totalorder %s110, 0
    %s113 = sadd.s32 %s112, 1
    %s114 = scalar_select %p111, %s112, %s113
    %p117 = pneg %p111
    %p118 = scmp.eq.s32.totalorder %s13, 3
    %p119 = por %p117, %p118
    %p120 = scmp.ne.s32.totalorder %s112, %s115
    %p121 = scmp.eq.s32.totalorder %s13, 0
    %p122 = por %p120, %p121
    %p123 = scmp.ne.s32.totalorder %s112, %s115
    %p124 = scmp.eq.s32.totalorder %s18, 3
    %p125 = por %p123, %p124
    %p126 = scmp.ne.s32.totalorder %s115, %s116
    %p127 = scmp.eq.s32.totalorder %s18, 0
    %p128 = por %p126, %p127
    %p129 = scmp.ne.s32.totalorder %s115, %s116
    %p130 = scmp.eq.s32.totalorder %s19, 3
    %p131 = por %p129, %p130
    %p133 = scmp.ne.s32.totalorder %s116, %s132
    %p134 = scmp.eq.s32.totalorder %s19, 0
    %p135 = por %p133, %p134
    %s136 = smul.u32 %s21, %s22
    %s137 = smul.u32 %s35, %s31
    %s138 = ssub.s32 %s20, %s39
    %s139 = ssub.s32 %s136, %s137
    %s140 = sor.u32 %s138, %s139
    %p141 = scmp.eq.s32.totalorder %s140, 0
    %s143 = sadd.s32 %s142, 1
    %s144 = scalar_select %p141, %s142, %s143
    %p147 = pneg %p141
    %p148 = scmp.eq.s32.totalorder %s13, 3
    %p149 = por %p147, %p148
    %p150 = scmp.ne.s32.totalorder %s142, %s145
    %p151 = scmp.eq.s32.totalorder %s13, 0
    %p152 = por %p150, %p151
    %p153 = scmp.ne.s32.totalorder %s142, %s145
    %p154 = scmp.eq.s32.totalorder %s18, 3
    %p155 = por %p153, %p154
    %p156 = scmp.ne.s32.totalorder %s145, %s146
    %p157 = scmp.eq.s32.totalorder %s18, 0
    %p158 = por %p156, %p157
    %p159 = scmp.ne.s32.totalorder %s145, %s146
    %p160 = scmp.eq.s32.totalorder %s19, 3
    %p161 = por %p159, %p160
    %p163 = scmp.ne.s32.totalorder %s146, %s162
    %p164 = scmp.eq.s32.totalorder %s19, 0
    %p165 = por %p163, %p164
    %s166 = smul.u32 %s21, %s22
    %s167 = smul.u32 %s35, %s31
    %s168 = ssub.s32 %s20, %s39
    %s169 = ssub.s32 %s166, %s167
    %s170 = sor.u32 %s168, %s169
    %p171 = scmp.eq.s32.totalorder %s170, 0
    %s173 = sadd.s32 %s172, 1
    %s174 = scalar_select %p171, %s172, %s173
    %p177 = pneg %p171
    %p178 = scmp.eq.s32.totalorder %s13, 3
    %p179 = por %p177, %p178
    %p180 = scmp.ne.s32.totalorder %s172, %s175
    %p181 = scmp.eq.s32.totalorder %s13, 0
    %p182 = por %p180, %p181
    %p183 = scmp.ne.s32.totalorder %s172, %s175
    %p184 = scmp.eq.s32.totalorder %s18, 3
    %p185 = por %p183, %p184
    %p186 = scmp.ne.s32.totalorder %s175, %s176
    %p187 = scmp.eq.s32.totalorder %s18, 0
    %p188 = por %p186, %p187
    %p189 = scmp.ne.s32.totalorder %s175, %s176
    %p190 = scmp.eq.s32.totalorder %s19, 3
    %p191 = por %p189, %p190
    %p193 = scmp.ne.s32.totalorder %s176, %s192
    %p194 = scmp.eq.s32.totalorder %s19, 0
    %p195 = por %p193, %p194
    %s196 = smul.u32 %s21, %s22
    %s197 = smul.u32 %s35, %s31
    %s198 = ssub.s32 %s20, %s39
    %s199 = ssub.s32 %s196, %s197
    %s200 = sor.u32 %s198, %s199
    %p201 = scmp.eq.s32.totalorder %s200, 0
    %s203 = sadd.s32 %s202, 1
    %s204 = scalar_select %p201, %s202, %s203
    %p207 = pneg %p201
    %p208 = scmp.eq.s32.totalorder %s13, 3
    %p209 = por %p207, %p208
    %p210 = scmp.ne.s32.totalorder %s202, %s205
    %p211 = scmp.eq.s32.totalorder %s13, 0
    %p212 = por %p210, %p211
    %p213 = scmp.ne.s32.totalorder %s202, %s205
    %p214 = scmp.eq.s32.totalorder %s18, 3
    %p215 = por %p213, %p214
    %p216 = scmp.ne.s32.totalorder %s205, %s206
    %p217 = scmp.eq.s32.totalorder %s18, 0
    %p218 = por %p216, %p217
    %p219 = scmp.ne.s32.totalorder %s205, %s206
    %p220 = scmp.eq.s32.totalorder %s19, 3
    %p221 = por %p219, %p220
    %p223 = scmp.ne.s32.totalorder %s206, %s222
    %p224 = scmp.eq.s32.totalorder %s19, 0
    %p225 = por %p223, %p224
    %p226 = scmp.le.s32.totalorder 1, %s13
    %p227 = scmp.lt.s32.totalorder %s13, 5
    %p228 = pnand %p226, %p227
    %p229 = pneg %p228
    // Predicated region
    $region9: #{conv_attention_forward.1} parent=5 // pred_check
      _
    $region10: #{conv_attention_forward.1} parent=5 // pred_check_branch
      %231 = sbr.rel (%p228) target = $region12
    $region11: #{conv_attention_forward.1} parent=5 // pred_region
      %s232 = ssub.s32 %s13, 1
      // Predicated region
      $region13: #{conv_attention_forward.1} parent=11 // pred_check
        %p233 = pneg %p79
      $region14: #{conv_attention_forward.1} parent=11 // pred_check_branch
        %235 = sbr.rel (%p233) target = $region16
      $region15: #{conv_attention_forward.1} parent=11 // pred_region
        _
      $region16: #{conv_attention_forward.1} parent=11 // pred_fallthru
        _
      // Predicated region
      $region17: #{conv_attention_forward.1} parent=11 // pred_check
        %p236 = pneg %p100
      $region18: #{conv_attention_forward.1} parent=11 // pred_check_branch
        %238 = sbr.rel (%p236) target = $region20
      $region19: #{conv_attention_forward.1} parent=11 // pred_region
        _
      $region20: #{conv_attention_forward.1} parent=11 // pred_fallthru
        _
    $region12: #{conv_attention_forward.1} parent=5 // pred_fallthru
      _
    %p239 = scmp.lt.s32.totalorder %s13, 4
    // Predicated region
    $region21: #{conv_attention_forward.1} parent=5 // pred_check
      %p240 = pneg %p239
    $region22: #{conv_attention_forward.1} parent=5 // pred_check_branch
      %242 = sbr.rel (%p240) target = $region24
    $region23: #{conv_attention_forward.1} parent=5 // pred_region
      // Predicated region
      $region25: #{conv_attention_forward.1} parent=23 // pred_check
        %p243 = pneg %p52
      $region26: #{conv_attention_forward.1} parent=23 // pred_check_branch
        %245 = sbr.rel (%p243) target = $region28
      $region27: #{conv_attention_forward.1} parent=23 // pred_region
        %p246 = scmp.lt.s32.totalorder %s20, 1
        %s247 = scalar_select %p246, %s20, 1
        %s248 = smul.addr %s247, 12
        %s249 = smul.addr %s248, 8
        %s250 = scalar_lea.vmem %s0, %s249
      $region28: #{conv_attention_forward.1} parent=23 // pred_fallthru
        _
      // Predicated region
      $region29: #{conv_attention_forward.1} parent=23 // pred_check
        %p251 = pneg %p122
      $region30: #{conv_attention_forward.1} parent=23 // pred_check_branch
        %253 = sbr.rel (%p251) target = $region32
      $region31: #{conv_attention_forward.1} parent=23 // pred_region
        %s254 = smul.u32 2, %s22
        %p255 = scmp.lt.s32.totalorder %s20, 1
        %s256 = scalar_select %p255, %s20, 1
        %p257 = scmp.lt.s32.totalorder %s254, 1
        %s258 = scalar_select %p257, %s254, 1
        %s259 = smul.addr %s256, 8
        %s260 = sadd.s32 %s258, %s259
        %s261 = smul.addr %s260, 8
        %s262 = scalar_lea.vmem %s3, %s261
        %s263 = smul.u32 2, %s22
      $region32: #{conv_attention_forward.1} parent=23 // pred_fallthru
        _
    $region24: #{conv_attention_forward.1} parent=5 // pred_fallthru
      _
    %p264 = scmp.le.s32.totalorder 1, %s13
    %p265 = scmp.lt.s32.totalorder %s13, 5
    %p266 = pnand %p264, %p265
    %p267 = pneg %p266
    // Predicated region
    $region33: #{conv_attention_forward.1} parent=5 // pred_check
      _
    $region34: #{conv_attention_forward.1} parent=5 // pred_check_branch
      %269 = sbr.rel (%p266) target = $region36
    $region35: #{conv_attention_forward.1} parent=5 // pred_region
      %s270 = ssub.s32 %s13, 1
      %p271 = scmp.lt.s32.totalorder %s23, 1
      %s272 = scalar_select %p271, %s23, 1
      %s273 = smul.addr %s272, 12
      %s274 = smul.addr %s273, 8
      %s275 = scalar_lea.vmem %s0, %s274
      %p276 = pneg %p58
      %p277 = pneg %p55
      %p278 = pneg %p79
      %p279 = pneg %p76
      %p280 = pneg %p100
      %p281 = pneg %p97
      %s282 = smul.u32 2, %s25
      %p283 = scmp.lt.s32.totalorder %s23, 1
      %s284 = scalar_select %p283, %s23, 1
      %p285 = scmp.lt.s32.totalorder %s282, 1
      %s286 = scalar_select %p285, %s282, 1
      %s287 = smul.addr %s284, 8
      %s288 = sadd.s32 %s286, %s287
      %s289 = smul.addr %s288, 8
      %s290 = scalar_lea.vmem %s3, %s289
      %p291 = pneg %p128
      %p292 = pneg %p125
      %p293 = pneg %p158
      %p294 = pneg %p155
      %s295 = smul.u32 %s24, %s25
      %s296 = smul.u32 4, %s23
      %s297 = smul.u32 2, %s295
      %p298 = scmp.lt.s32.totalorder %s296, 7
      %s299 = scalar_select %p298, %s296, 7
      %p300 = scmp.lt.s32.totalorder %s297, 1
      %s301 = scalar_select %p300, %s297, 1
      %s302 = smul.addr %s299, 2
      %s303 = sadd.s32 %s301, %s302
      %s304 = smul.addr %s303, 8
      %s305 = scalar_lea.vmem %s4, %s304
      %p306 = pneg %p188
      %p307 = pneg %p185
      %s308 = smul.u32 %s24, %s25
      %s309 = smul.u32 4, %s23
      %s310 = smul.u32 2, %s308
      %p311 = scmp.lt.s32.totalorder %s309, 7
      %s312 = scalar_select %p311, %s309, 7
      %p313 = scmp.lt.s32.totalorder %s310, 1
      %s314 = scalar_select %p313, %s310, 1
      %s315 = smul.addr %s312, 2
      %s316 = sadd.s32 %s314, %s315
      %s317 = smul.addr %s316, 8
      %s318 = scalar_lea.vmem %s5, %s317
      %p319 = pneg %p218
      %p320 = pneg %p215
      %s321 = smul.u32 %s24, %s25
      %s322 = smul.u32 4, %s23
      %s323 = smul.u32 2, %s321
      %p324 = scmp.lt.s32.totalorder %s322, 7
      %s325 = scalar_select %p324, %s322, 7
      %p326 = scmp.lt.s32.totalorder %s323, 1
      %s327 = scalar_select %p326, %s323, 1
      %s328 = smul.addr %s325, 2
      %s329 = sadd.s32 %s327, %s328
      %s330 = smul.addr %s329, 8
      %s331 = scalar_lea.vmem %s6, %s330
      %p332 = scmp.lt.s32.totalorder %s23, 1
      %s333 = scalar_select %p332, %s23, 1
      %s334 = smul.addr %s333, 12
      %s335 = smul.addr %s334, 8
      %s336 = scalar_lea.vmem %s0, %s335
      %s337 = smul.u32 2, %s25
      %p338 = scmp.lt.s32.totalorder %s23, 1
      %s339 = scalar_select %p338, %s23, 1
      %p340 = scmp.lt.s32.totalorder %s337, 1
      %s341 = scalar_select %p340, %s337, 1
      %s342 = smul.addr %s339, 8
      %s343 = sadd.s32 %s341, %s342
      %s344 = smul.addr %s343, 8
      %s345 = scalar_lea.vmem %s3, %s344
      %s346 = smul.u32 2, %s25
      %s347 = smul.u32 %s24, %s25
      %s348 = smul.u32 4, %s23
      %s349 = smul.u32 2, %s347
      %p350 = scmp.lt.s32.totalorder %s348, 7
      %s351 = scalar_select %p350, %s348, 7
      %p352 = scmp.lt.s32.totalorder %s349, 1
      %s353 = scalar_select %p352, %s349, 1
      %s354 = smul.addr %s351, 2
      %s355 = sadd.s32 %s353, %s354
      %s356 = smul.addr %s355, 8
      %s357 = scalar_lea.vmem %s4, %s356
      %s358 = smul.u32 %s24, %s25
      %s359 = smul.u32 4, %s23
      %s360 = smul.u32 2, %s358
      %s361 = smul.u32 %s24, %s25
      %s362 = smul.u32 4, %s23
      %s363 = smul.u32 2, %s361
      %p364 = scmp.lt.s32.totalorder %s362, 7
      %s365 = scalar_select %p364, %s362, 7
      %p366 = scmp.lt.s32.totalorder %s363, 1
      %s367 = scalar_select %p366, %s363, 1
      %s368 = smul.addr %s365, 2
      %s369 = sadd.s32 %s367, %s368
      %s370 = smul.addr %s369, 8
      %s371 = scalar_lea.vmem %s5, %s370
      %s372 = smul.u32 %s24, %s25
      %s373 = smul.u32 4, %s23
      %s374 = smul.u32 2, %s372
      %s375 = smul.u32 %s24, %s25
      %s376 = smul.u32 4, %s23
      %s377 = smul.u32 2, %s375
      %p378 = scmp.lt.s32.totalorder %s376, 7
      %s379 = scalar_select %p378, %s376, 7
      %p380 = scmp.lt.s32.totalorder %s377, 1
      %s381 = scalar_select %p380, %s377, 1
      %s382 = smul.addr %s379, 2
      %s383 = sadd.s32 %s381, %s382
      %s384 = smul.addr %s383, 8
      %s385 = scalar_lea.vmem %s6, %s384
      %s386 = smul.u32 %s24, %s25
      %s387 = smul.u32 4, %s23
      %s388 = smul.u32 2, %s386
      %p389 = scmp.eq.s32.totalorder %s24, 0
      %p390 = scmp.eq.s32.totalorder %s25, 0
      %p391 = pnand %p389, %p390
      %p392 = pneg %p391
      // Predicated region
      $region37: #{conv_attention_forward.1} parent=35 // pred_check
        _
      $region38: #{conv_attention_forward.1} parent=35 // pred_check_branch
        %394 = sbr.rel (%p391) target = $region40
      $region39: #{conv_attention_forward.1} parent=35 // pred_region
        %vm395 = vcmask 261120
        %396 = vst.msk [vmem:[#allocation2] sm:$0xff] %vm395, 0.0
        %397 = vst.msk [vmem:[#allocation2 + $0x8] sm:$0xff] %vm395, 0.0
        %398 = vst.msk [vmem:[#allocation2 + $0x10] sm:$0xff] %vm395, 0.0
        %399 = vst.msk [vmem:[#allocation2 + $0x18] sm:$0xff] %vm395, 0.0
        %vm400 = vcmask 7168
        %401 = vst.msk [vmem:[#allocation3] sm:$0xff] %vm400, 0.0
        %402 = vst.msk [vmem:[#allocation3 + $0x8] sm:$0xff] %vm400, 0.0
        %403 = vst.msk [vmem:[#allocation3 + $0x10] sm:$0xff] %vm400, 0.0
        %404 = vst.msk [vmem:[#allocation3 + $0x18] sm:$0xff] %vm400, 0.0
        %405 = vst.msk [vmem:[#allocation4] sm:$0xff] %vm400, 0.0
        %406 = vst.msk [vmem:[#allocation4 + $0x8] sm:$0xff] %vm400, 0.0
        %407 = vst.msk [vmem:[#allocation4 + $0x10] sm:$0xff] %vm400, 0.0
        %408 = vst.msk [vmem:[#allocation4 + $0x18] sm:$0xff] %vm400, 0.0
      $region40: #{conv_attention_forward.1} parent=35 // pred_fallthru
        _
      // Predicated region
      $region41: #{conv_attention_forward.1} parent=35 // pred_check
        %p409 = pneg %p389
      $region42: #{conv_attention_forward.1} parent=35 // pred_check_branch
        %411 = sbr.rel (%p409) target = $region44
      $region43: #{conv_attention_forward.1} parent=35 // pred_region
        %v412 = vld [vmem:[%s345] sm:$0xff]
        %v413 = vld [vmem:[%s345 + $0x8] sm:$0xff]
        %v414 = vld [vmem:[%s345 + $0x10] sm:$0xff]
        %v415 = vld [vmem:[%s345 + $0x18] sm:$0xff]
        %v416 = vld [vmem:[%s345 + $0x20] sm:$0xff]
        %v417 = vld [vmem:[%s345 + $0x28] sm:$0xff]
        %v418 = vld [vmem:[%s345 + $0x30] sm:$0xff]
        %v419 = vld [vmem:[%s345 + $0x38] sm:$0xff]
        %v420 = vld [vmem:[%s336] sm:$0xff]
        %v421 = vld [vmem:[%s336 + $0x8] sm:$0xff]
        %v422 = vld [vmem:[%s336 + $0x10] sm:$0xff]
        %v423 = vld [vmem:[%s336 + $0x18] sm:$0xff]
        %v424 = vld [vmem:[%s336 + $0x20] sm:$0xff]
        %v425 = vld [vmem:[%s336 + $0x28] sm:$0xff]
        %v426 = vld [vmem:[%s336 + $0x30] sm:$0xff]
        %v427 = vld [vmem:[%s336 + $0x38] sm:$0xff]
        %vm428 = vcmask 261120
        %v430 = vsel %vm428, %v420, 0
        %v433 = vsel %vm428, %v421, 0
        %v436 = vsel %vm428, %v422, 0
        %v439 = vsel %vm428, %v423, 0
        %v442 = vsel %vm428, %v424, 0
        %v445 = vsel %vm428, %v425, 0
        %v448 = vsel %vm428, %v426, 0
        %v451 = vsel %vm428, %v427, 0
        %453 = vmatprep.subr.mxu0 %v413
        %454 = vmatpush1.msra.mxu0 %v412
        %455 = vmatprep.subr.mxu0 %v415
        %456 = vmatpush1.msra.mxu0 %v414
        %457 = vmatprep.subr.mxu0 %v417
        %458 = vmatpush1.msra.mxu0 %v416
        %459 = vmatprep.subr.mxu0 %v419
        %460 = vmatpush1.msra.mxu0 %v418
        %461 = vmatprep.subr.mxu0 0.0
        %462 = vmatpush1.msra.mxu0 0.0
        %463 = vmatprep.subr.mxu0 0.0
        %464 = vmatpush1.msra.mxu0 0.0
        %465 = vmatprep.subr.mxu0 0.0
        %466 = vmatpush1.msra.mxu0 0.0
        %467 = vmatprep.subr.mxu0 0.0
        %468 = vmatpush1.msra.mxu0 0.0
        %469 = vmatprep.subr.mxu0 0.0
        %470 = vmatpush1.msra.mxu0 0.0
        %471 = vmatprep.subr.mxu0 0.0
        %472 = vmatpush1.msra.mxu0 0.0
        %473 = vmatprep.subr.mxu0 0.0
        %474 = vmatpush1.msra.mxu0 0.0
        %475 = vmatprep.subr.mxu0 0.0
        %476 = vmatpush1.msra.mxu0 0.0
        %477 = vmatprep.subr.mxu0 0.0
        %478 = vmatpush1.msra.mxu0 0.0
        %479 = vmatprep.subr.mxu0 0.0
        %480 = vmatpush1.msra.mxu0 0.0
        %481 = vmatprep.subr.mxu0 0.0
        %482 = vmatpush1.msra.mxu0 0.0
        %483 = vmatprep.subr.mxu0 0.0
        %484 = vmatpush1.msra.mxu0 0.0
        %485 = vmatprep.subr.mxu0 0.0
        %486 = vmatpush1.msra.mxu0 0.0
        %487 = vmatprep.subr.mxu0 0.0
        %488 = vmatpush1.msra.mxu0 0.0
        %489 = vmatprep.subr.mxu0 0.0
        %490 = vmatpush1.msra.mxu0 0.0
        %491 = vmatprep.subr.mxu0 0.0
        %492 = vmatpush1.msra.mxu0 0.0
        %493 = vmatprep.subr.mxu0 0.0
        %494 = vmatpush1.msra.mxu0 0.0
        %495 = vmatprep.subr.mxu0 0.0
        %496 = vmatpush1.msra.mxu0 0.0
        %497 = vmatprep.subr.mxu0 0.0
        %498 = vmatpush1.msra.mxu0 0.0
        %499 = vmatprep.subr.mxu0 0.0
        %500 = vmatpush1.msra.mxu0 0.0
        %501 = vmatprep.subr.mxu0 0.0
        %502 = vmatpush1.msra.mxu0 0.0
        %503 = vmatprep.subr.mxu0 0.0
        %504 = vmatpush1.msra.mxu0 0.0
        %505 = vmatprep.subr.mxu0 0.0
        %506 = vmatpush1.msra.mxu0 0.0
        %507 = vmatprep.subr.mxu0 0.0
        %508 = vmatpush1.msra.mxu0 0.0
        %509 = vmatprep.subr.mxu0 0.0
        %510 = vmatpush1.msra.mxu0 0.0
        %511 = vmatprep.subr.mxu0 0.0
        %512 = vmatpush1.msra.mxu0 0.0
        %513 = vmatprep.subr.mxu0 0.0
        %514 = vmatpush1.msra.mxu0 0.0
        %515 = vmatprep.subr.mxu0 0.0
        %516 = vmatpush1.msra.mxu0 0.0
        %517 = vmatprep.mubr.f32.mxu0 0.0
        %518 = vmatmul.mubr.f32.gmra.mrb[0].mxu0 %v430
        %v519 = vpop.f32.mrb[0].mxu0
        %v520 = vadd.f32 0.0, %v519
        %v521 = vpop.f32.mrb[0].mxu0
        %v522 = vadd.f32 0.0, %v521
        %523 = vmatprep.mubr.f32.mxu0 0.0
        %524 = vmatmul.mubr.f32.gmra.mrb[0].mxu0 %v433
        %v525 = vpop.f32.mrb[0].mxu0
        %v526 = vadd.f32 0.0, %v525
        %v527 = vpop.f32.mrb[0].mxu0
        %v528 = vadd.f32 0.0, %v527
        %529 = vmatprep.mubr.f32.mxu0 0.0
        %530 = vmatmul.mubr.f32.gmra.mrb[0].mxu0 %v436
        %v531 = vpop.f32.mrb[0].mxu0
        %v532 = vadd.f32 0.0, %v531
        %v533 = vpop.f32.mrb[0].mxu0
        %v534 = vadd.f32 0.0, %v533
        %535 = vmatprep.mubr.f32.mxu0 0.0
        %536 = vmatmul.mubr.f32.gmra.mrb[0].mxu0 %v439
        %v537 = vpop.f32.mrb[0].mxu0
        %v538 = vadd.f32 0.0, %v537
        %v539 = vpop.f32.mrb[0].mxu0
        %v540 = vadd.f32 0.0, %v539
        %541 = vmatprep.mubr.f32.mxu0 0.0
        %542 = vmatmul.mubr.f32.gmra.mrb[0].mxu0 %v442
        %v543 = vpop.f32.mrb[0].mxu0
        %v544 = vadd.f32 0.0, %v543
        %v545 = vpop.f32.mrb[0].mxu0
        %v546 = vadd.f32 0.0, %v545
        %547 = vmatprep.mubr.f32.mxu0 0.0
        %548 = vmatmul.mubr.f32.gmra.mrb[0].mxu0 %v445
        %v549 = vpop.f32.mrb[0].mxu0
        %v550 = vadd.f32 0.0, %v549
        %v551 = vpop.f32.mrb[0].mxu0
        %v552 = vadd.f32 0.0, %v551
        %553 = vmatprep.mubr.f32.mxu0 0.0
        %554 = vmatmul.mubr.f32.gmra.mrb[0].mxu0 %v448
        %v555 = vpop.f32.mrb[0].mxu0
        %v556 = vadd.f32 0.0, %v555
        %v557 = vpop.f32.mrb[0].mxu0
        %v558 = vadd.f32 0.0, %v557
        %559 = vmatprep.mubr.f32.mxu0 0.0
        %560 = vmatmul.mubr.f32.gmra.mrb[0].mxu0 %v451
        %v561 = vpop.f32.mrb[0].mxu0
        %v562 = vadd.f32 0.0, %v561
        %v563 = vpop.f32.mrb[0].mxu0
        %v564 = vadd.f32 0.0, %v563
        %565 = vdwg.mxu0
        %v566 = vld [vmem:[#allocation2] sm:$0xff]
        %v567 = vld [vmem:[#allocation2 + $0x8] sm:$0xff]
        %v568 = vld [vmem:[#allocation2 + $0x10] sm:$0xff]
        %v569 = vld [vmem:[#allocation2 + $0x18] sm:$0xff]
        %570 = vmatprep.subr.mxu0 %v546
        %571 = vmatpush1.xpose.msra.mxu0 %v544
        %572 = vmatprep.subr.mxu0 %v552
        %573 = vmatpush1.xpose.msra.mxu0 %v550
        %574 = vmatprep.subr.mxu0 %v558
        %575 = vmatpush1.xpose.msra.mxu0 %v556
        %576 = vmatprep.subr.mxu0 %v564
        %577 = vmatpush1.xpose.msra.mxu0 %v562
        %578 = vmatprep.subr.mxu0 0.0
        %579 = vmatpush1.xpose.msra.mxu0 0.0
        %580 = vmatprep.subr.mxu0 0.0
        %581 = vmatpush1.xpose.msra.mxu0 0.0
        %582 = vmatprep.subr.mxu0 0.0
        %583 = vmatpush1.xpose.msra.mxu0 0.0
        %584 = vmatprep.subr.mxu0 0.0
        %585 = vmatpush1.xpose.msra.mxu0 0.0
        %586 = vmatprep.subr.mxu0 0.0
        %587 = vmatpush1.xpose.msra.mxu0 0.0
        %588 = vmatprep.subr.mxu0 0.0
        %589 = vmatpush1.xpose.msra.mxu0 0.0
        %590 = vmatprep.subr.mxu0 0.0
        %591 = vmatpush1.xpose.msra.mxu0 0.0
        %592 = vmatprep.subr.mxu0 0.0
        %593 = vmatpush1.xpose.msra.mxu0 0.0
        %594 = vmatprep.subr.mxu0 0.0
        %595 = vmatpush1.xpose.msra.mxu0 0.0
        %596 = vmatprep.subr.mxu0 0.0
        %597 = vmatpush1.xpose.msra.mxu0 0.0
        %598 = vmatprep.subr.mxu0 0.0
        %599 = vmatpush1.xpose.msra.mxu0 0.0
        %600 = vmatprep.subr.mxu0 0.0
        %601 = vmatpush1.xpose.msra.mxu0 0.0
        %602 = vmatprep.subr.mxu0 0.0
        %603 = vmatpush1.xpose.msra.mxu0 0.0
        %604 = vmatprep.subr.mxu0 0.0
        %605 = vmatpush1.xpose.msra.mxu0 0.0
        %606 = vmatprep.subr.mxu0 0.0
        %607 = vmatpush1.xpose.msra.mxu0 0.0
        %608 = vmatprep.subr.mxu0 0.0
        %609 = vmatpush1.xpose.msra.mxu0 0.0
        %610 = vmatprep.subr.mxu0 0.0
        %611 = vmatpush1.xpose.msra.mxu0 0.0
        %612 = vmatprep.subr.mxu0 0.0
        %613 = vmatpush1.xpose.msra.mxu0 0.0
        %614 = vmatprep.subr.mxu0 0.0
        %615 = vmatpush1.xpose.msra.mxu0 0.0
        %616 = vmatprep.subr.mxu0 0.0
        %617 = vmatpush1.xpose.msra.mxu0 0.0
        %618 = vmatprep.subr.mxu0 0.0
        %619 = vmatpush1.xpose.msra.mxu0 0.0
        %620 = vmatprep.subr.mxu0 0.0
        %621 = vmatpush1.xpose.msra.mxu0 0.0
        %622 = vmatprep.subr.mxu0 0.0
        %623 = vmatpush1.xpose.msra.mxu0 0.0
        %624 = vmatprep.subr.mxu0 0.0
        %625 = vmatpush1.xpose.msra.mxu0 0.0
        %626 = vmatprep.subr.mxu0 0.0
        %627 = vmatpush1.xpose.msra.mxu0 0.0
        %628 = vmatprep.subr.mxu0 0.0
        %629 = vmatpush1.xpose.msra.mxu0 0.0
        %630 = vmatprep.subr.mxu0 0.0
        %631 = vmatpush1.xpose.msra.mxu0 0.0
        %632 = vmatprep.subr.mxu0 0.0
        %633 = vmatpush1.xpose.msra.mxu0 0.0
        %634 = vmatprep.mubr.f32.mxu0 %v522
        %635 = vmatmul.mubr.f32.gmra.mrb[0].mxu0 %v520
        %v636 = vpop.f32.mrb[0].mxu0
        %v637 = vadd.f32 0.0, %v636
        %v638 = vpop.f32.mrb[0].mxu0
        %639 = vmatprep.mubr.f32.mxu0 %v528
        %640 = vmatmul.mubr.f32.gmra.mrb[0].mxu0 %v526
        %v641 = vpop.f32.mrb[0].mxu0
        %v642 = vadd.f32 0.0, %v641
        %v643 = vpop.f32.mrb[0].mxu0
        %644 = vmatprep.mubr.f32.mxu0 %v534
        %645 = vmatmul.mubr.f32.gmra.mrb[0].mxu0 %v532
        %v646 = vpop.f32.mrb[0].mxu0
        %v647 = vadd.f32 0.0, %v646
        %v648 = vpop.f32.mrb[0].mxu0
        %649 = vmatprep.mubr.f32.mxu0 %v540
        %650 = vmatmul.mubr.f32.gmra.mrb[0].mxu0 %v538
        %v651 = vpop.f32.mrb[0].mxu0
        %v652 = vadd.f32 0.0, %v651
        %v653 = vpop.f32.mrb[0].mxu0
        %654 = vdwg.mxu0
        %v655 = vadd.f32 %v566, %v637
        %v656 = vadd.f32 %v567, %v642
        %v657 = vadd.f32 %v568, %v647
        %v658 = vadd.f32 %v569, %v652
        %659 = vst.msk [vmem:[#allocation2] sm:$0xff] %vm428, %v655
        %660 = vst.msk [vmem:[#allocation2 + $0x8] sm:$0xff] %vm428, %v656
        %661 = vst.msk [vmem:[#allocation2 + $0x10] sm:$0xff] %vm428, %v657
        %662 = vst.msk [vmem:[#allocation2 + $0x18] sm:$0xff] %vm428, %v658
        %v663 = vld [vmem:[#allocation3] sm:$0xff]
        %v664 = vld [vmem:[#allocation3 + $0x8] sm:$0xff]
        %v665 = vld [vmem:[#allocation3 + $0x10] sm:$0xff]
        %v666 = vld [vmem:[#allocation3 + $0x18] sm:$0xff]
        %v667 = vmul.f32 %v520, %v520
        %v668 = vmul.f32 %v522, %v522
        %v669 = vmul.f32 %v526, %v526
        %v670 = vmul.f32 %v528, %v528
        %v671 = vmul.f32 %v532, %v532
        %v672 = vmul.f32 %v534, %v534
        %v673 = vmul.f32 %v538, %v538
        %v674 = vmul.f32 %v540, %v540
        %v675 = vadd.f32 %v667, %v668
        %676 = vadd.xlane.f32.xlu0 %v675
        %v677 = vpop.xlane.xlu0 %676
        %v678 = vadd.f32 %v669, %v670
        %679 = vadd.xlane.f32.xlu0 %v678
        %v680 = vpop.xlane.xlu0 %679
        %v681 = vadd.f32 %v671, %v672
        %682 = vadd.xlane.f32.xlu0 %v681
        %v683 = vpop.xlane.xlu0 %682
        %v684 = vadd.f32 %v673, %v674
        %685 = vadd.xlane.f32.xlu0 %v684
        %v686 = vpop.xlane.xlu0 %685
        %v687 = vadd.f32 %v663, %v677
        %v688 = vadd.f32 %v664, %v680
        %v689 = vadd.f32 %v665, %v683
        %v690 = vadd.f32 %v666, %v686
        %vm691 = vcmask 7168
        %692 = vst.msk [vmem:[#allocation3] sm:$0xff] %vm691, %v687
        %693 = vst.msk [vmem:[#allocation3 + $0x8] sm:$0xff] %vm691, %v688
        %694 = vst.msk [vmem:[#allocation3 + $0x10] sm:$0xff] %vm691, %v689
        %695 = vst.msk [vmem:[#allocation3 + $0x18] sm:$0xff] %vm691, %v690
        %v696 = vld [vmem:[#allocation4] sm:$0xff]
        %v697 = vld [vmem:[#allocation4 + $0x8] sm:$0xff]
        %v698 = vld [vmem:[#allocation4 + $0x10] sm:$0xff]
        %v699 = vld [vmem:[#allocation4 + $0x18] sm:$0xff]
        %v700 = vmul.f32 %v544, %v544
        %v701 = vmul.f32 %v546, %v546
        %v702 = vmul.f32 %v550, %v550
        %v703 = vmul.f32 %v552, %v552
        %v704 = vmul.f32 %v556, %v556
        %v705 = vmul.f32 %v558, %v558
        %v706 = vmul.f32 %v562, %v562
        %v707 = vmul.f32 %v564, %v564
        %v708 = vadd.f32 %v700, %v701
        %709 = vadd.xlane.f32.xlu0 %v708
        %v710 = vpop.xlane.xlu0 %709
        %v711 = vadd.f32 %v702, %v703
        %712 = vadd.xlane.f32.xlu0 %v711
        %v713 = vpop.xlane.xlu0 %712
        %v714 = vadd.f32 %v704, %v705
        %715 = vadd.xlane.f32.xlu0 %v714
        %v716 = vpop.xlane.xlu0 %715
        %v717 = vadd.f32 %v706, %v707
        %718 = vadd.xlane.f32.xlu0 %v717
        %v719 = vpop.xlane.xlu0 %718
        %v720 = vadd.f32 %v696, %v710
        %v721 = vadd.f32 %v697, %v713
        %v722 = vadd.f32 %v698, %v716
        %v723 = vadd.f32 %v699, %v719
        %724 = vst.msk [vmem:[#allocation4] sm:$0xff] %vm691, %v720
        %725 = vst.msk [vmem:[#allocation4 + $0x8] sm:$0xff] %vm691, %v721
        %726 = vst.msk [vmem:[#allocation4 + $0x10] sm:$0xff] %vm691, %v722
        %727 = vst.msk [vmem:[#allocation4 + $0x18] sm:$0xff] %vm691, %v723
      $region44: #{conv_attention_forward.1} parent=35 // pred_fallthru
        _
      %p728 = scmp.eq.s32.totalorder %s24, 1
      %p729 = pnand %p728, %p390
      %p730 = pneg %p729
      // Predicated region
      $region45: #{conv_attention_forward.1} parent=35 // pred_check
        _
      $region46: #{conv_attention_forward.1} parent=35 // pred_check_branch
        %732 = sbr.rel (%p729) target = $region48
      $region47: #{conv_attention_forward.1} parent=35 // pred_region
        %v733 = vld [vmem:[#allocation3] sm:$0xff]
        %v734 = vld [vmem:[#allocation3 + $0x8] sm:$0xff]
        %v735 = vld [vmem:[#allocation3 + $0x10] sm:$0xff]
        %v736 = vld [vmem:[#allocation3 + $0x18] sm:$0xff]
        %v737 = vmax.f32 %v733, 1e-24
        %v738 = vmax.f32 %v734, 1e-24
        %v739 = vmax.f32 %v735, 1e-24
        %v740 = vmax.f32 %v736, 1e-24
        %v741 = vrsqrt.pop %v737
        %v742 = vrsqrt.pop %v738
        %v743 = vrsqrt.pop %v739
        %v744 = vrsqrt.pop %v740
        %v745 = vld [vmem:[#allocation4] sm:$0xff]
        %v746 = vld [vmem:[#allocation4 + $0x8] sm:$0xff]
        %v747 = vld [vmem:[#allocation4 + $0x10] sm:$0xff]
        %v748 = vld [vmem:[#allocation4 + $0x18] sm:$0xff]
        %v749 = vmax.f32 %v745, 1e-24
        %v750 = vmax.f32 %v746, 1e-24
        %v751 = vmax.f32 %v747, 1e-24
        %v752 = vmax.f32 %v748, 1e-24
        %v753 = vrsqrt.pop %v749
        %v754 = vrsqrt.pop %v750
        %v755 = vrsqrt.pop %v751
        %v756 = vrsqrt.pop %v752
        %vm757 = vcmask 7168
        %758 = vst.msk [vmem:[#allocation5] sm:$0xff] %vm757, %v753
        %759 = vst.msk [vmem:[#allocation5 + $0x8] sm:$0xff] %vm757, %v754
        %760 = vst.msk [vmem:[#allocation5 + $0x10] sm:$0xff] %vm757, %v755
        %761 = vst.msk [vmem:[#allocation5 + $0x18] sm:$0xff] %vm757, %v756
        %v762 = vlaneseq
        %v763 = vshrl.u32 %v762, 7
        %v764 = vadd.s32 %v763, 8
        %v765 = vadd.s32 %v763, 16
        %v766 = vadd.s32 %v763, 24
        %v767 = vlaneseq
        %v768 = vand.u32 %v767, 127
        %vm769 = vcmp.eq.s32.totalorder %v763, %v768
        %vm770 = vcmp.eq.s32.totalorder %v764, %v768
        %vm771 = vcmp.eq.s32.totalorder %v765, %v768
        %vm772 = vcmp.eq.s32.totalorder %v766, %v768
        %774 = vset.pattern.permute.xlu0 0
        %775 = vperm.xlu0 %774, %v753
        %v776 = vpop.permute.xlu0 %775
        %779 = vset.pattern.permute.xlu0 0
        %780 = vperm.xlu0 %779, %v754
        %v781 = vpop.permute.xlu0 %780
        %784 = vset.pattern.permute.xlu0 0
        %785 = vperm.xlu0 %784, %v755
        %v786 = vpop.permute.xlu0 %785
        %789 = vset.pattern.permute.xlu0 0
        %790 = vperm.xlu0 %789, %v756
        %v791 = vpop.permute.xlu0 %790
        %v793 = vsel %vm769, %v776, 0.0
        %v794 = vsel %vm770, %v781, 0.0
        %v795 = vsel %vm771, %v786, 0.0
        %v796 = vsel %vm772, %v791, 0.0
        %v797 = vld [vmem:[#allocation2] sm:$0xff]
        %v798 = vld [vmem:[#allocation2 + $0x8] sm:$0xff]
        %v799 = vld [vmem:[#allocation2 + $0x10] sm:$0xff]
        %v800 = vld [vmem:[#allocation2 + $0x18] sm:$0xff]
        %802 = vset.pattern.permute.xlu0 0
        %803 = vperm.xlu0 %802, %v741
        %v804 = vpop.permute.xlu0 %803
        %807 = vset.pattern.permute.xlu0 0
        %808 = vperm.xlu0 %807, %v742
        %v809 = vpop.permute.xlu0 %808
        %812 = vset.pattern.permute.xlu0 0
        %813 = vperm.xlu0 %812, %v743
        %v814 = vpop.permute.xlu0 %813
        %817 = vset.pattern.permute.xlu0 0
        %818 = vperm.xlu0 %817, %v744
        %v819 = vpop.permute.xlu0 %818
        %v821 = vmul.f32 %v804, %v797
        %v822 = vmul.f32 %v809, %v798
        %v823 = vmul.f32 %v814, %v799
        %v824 = vmul.f32 %v819, %v800
        %vm825 = vcmask 261120
        %v827 = vsel %vm825, %v821, 0
        %v830 = vsel %vm825, %v822, 0
        %v833 = vsel %vm825, %v823, 0
        %v836 = vsel %vm825, %v824, 0
        %838 = vmatprep.subr.mxu0 0.0
        %839 = vmatpush1.msra.mxu0 %v793
        %840 = vmatprep.subr.mxu0 0.0
        %841 = vmatpush1.msra.mxu0 %v794
        %842 = vmatprep.subr.mxu0 0.0
        %843 = vmatpush1.msra.mxu0 %v795
        %844 = vmatprep.subr.mxu0 0.0
        %845 = vmatpush1.msra.mxu0 %v796
        %846 = vmatprep.subr.mxu0 0.0
        %847 = vmatpush1.msra.mxu0 0.0
        %848 = vmatprep.subr.mxu0 0.0
        %849 = vmatpush1.msra.mxu0 0.0
        %850 = vmatprep.subr.mxu0 0.0
        %851 = vmatpush1.msra.mxu0 0.0
        %852 = vmatprep.subr.mxu0 0.0
        %853 = vmatpush1.msra.mxu0 0.0
        %854 = vmatprep.subr.mxu0 0.0
        %855 = vmatpush1.msra.mxu0 0.0
        %856 = vmatprep.subr.mxu0 0.0
        %857 = vmatpush1.msra.mxu0 0.0
        %858 = vmatprep.subr.mxu0 0.0
        %859 = vmatpush1.msra.mxu0 0.0
        %860 = vmatprep.subr.mxu0 0.0
        %861 = vmatpush1.msra.mxu0 0.0
        %862 = vmatprep.subr.mxu0 0.0
        %863 = vmatpush1.msra.mxu0 0.0
        %864 = vmatprep.subr.mxu0 0.0
        %865 = vmatpush1.msra.mxu0 0.0
        %866 = vmatprep.subr.mxu0 0.0
        %867 = vmatpush1.msra.mxu0 0.0
        %868 = vmatprep.subr.mxu0 0.0
        %869 = vmatpush1.msra.mxu0 0.0
        %870 = vmatprep.subr.mxu0 0.0
        %871 = vmatpush1.msra.mxu0 0.0
        %872 = vmatprep.subr.mxu0 0.0
        %873 = vmatpush1.msra.mxu0 0.0
        %874 = vmatprep.subr.mxu0 0.0
        %875 = vmatpush1.msra.mxu0 0.0
        %876 = vmatprep.subr.mxu0 0.0
        %877 = vmatpush1.msra.mxu0 0.0
        %878 = vmatprep.subr.mxu0 0.0
        %879 = vmatpush1.msra.mxu0 0.0
        %880 = vmatprep.subr.mxu0 0.0
        %881 = vmatpush1.msra.mxu0 0.0
        %882 = vmatprep.subr.mxu0 0.0
        %883 = vmatpush1.msra.mxu0 0.0
        %884 = vmatprep.subr.mxu0 0.0
        %885 = vmatpush1.msra.mxu0 0.0
        %886 = vmatprep.subr.mxu0 0.0
        %887 = vmatpush1.msra.mxu0 0.0
        %888 = vmatprep.subr.mxu0 0.0
        %889 = vmatpush1.msra.mxu0 0.0
        %890 = vmatprep.subr.mxu0 0.0
        %891 = vmatpush1.msra.mxu0 0.0
        %892 = vmatprep.subr.mxu0 0.0
        %893 = vmatpush1.msra.mxu0 0.0
        %894 = vmatprep.subr.mxu0 0.0
        %895 = vmatpush1.msra.mxu0 0.0
        %896 = vmatprep.subr.mxu0 0.0
        %897 = vmatpush1.msra.mxu0 0.0
        %898 = vmatprep.subr.mxu0 0.0
        %899 = vmatpush1.msra.mxu0 0.0
        %900 = vmatprep.subr.mxu0 0.0
        %901 = vmatpush1.msra.mxu0 0.0
        %902 = vmatprep.mubr.f32.mxu0 0.0
        %903 = vmatmul.mubr.f32.gmra.mrb[0].mxu0 %v827
        %v904 = vpop.f32.mrb[0].mxu0
        %v905 = vadd.f32 0.0, %v904
        %v906 = vpop.f32.mrb[0].mxu0
        %907 = vmatprep.mubr.f32.mxu0 0.0
        %908 = vmatmul.mubr.f32.gmra.mrb[0].mxu0 %v830
        %v909 = vpop.f32.mrb[0].mxu0
        %v910 = vadd.f32 0.0, %v909
        %v911 = vpop.f32.mrb[0].mxu0
        %912 = vmatprep.mubr.f32.mxu0 0.0
        %913 = vmatmul.mubr.f32.gmra.mrb[0].mxu0 %v833
        %v914 = vpop.f32.mrb[0].mxu0
        %v915 = vadd.f32 0.0, %v914
        %v916 = vpop.f32.mrb[0].mxu0
        %917 = vmatprep.mubr.f32.mxu0 0.0
        %918 = vmatmul.mubr.f32.gmra.mrb[0].mxu0 %v836
        %v919 = vpop.f32.mrb[0].mxu0
        %v920 = vadd.f32 0.0, %v919
        %v921 = vpop.f32.mrb[0].mxu0
        %922 = vdwg.mxu0
        %v923 = vld [vmem:[%s1] sm:$0xff]
        %v924 = vld [vmem:[%s1 + $0x8] sm:$0xff]
        %v925 = vld [vmem:[%s1 + $0x10] sm:$0xff]
        %v926 = vld [vmem:[%s1 + $0x18] sm:$0xff]
        %v927 = vmul.f32 %v905, %v923
        %v928 = vmul.f32 %v910, %v924
        %v929 = vmul.f32 %v915, %v925
        %v930 = vmul.f32 %v920, %v926
        %v931 = vld [vmem:[%s2] sm:$0xff]
        %v932 = vld [vmem:[%s2 + $0x8] sm:$0xff]
        %v933 = vld [vmem:[%s2 + $0x10] sm:$0xff]
        %v934 = vld [vmem:[%s2 + $0x18] sm:$0xff]
        %v935 = vadd.f32 %v927, %v931
        %v936 = vadd.f32 %v928, %v932
        %v937 = vadd.f32 %v929, %v933
        %v938 = vadd.f32 %v930, %v934
        %v939 = vsel %vm825, %v935, -inf
        %940 = vmax.xlane.f32.xlu0 %v939
        %v941 = vpop.xlane.xlu0 %940
        %v942 = vsel %vm825, %v936, -inf
        %943 = vmax.xlane.f32.xlu0 %v942
        %v944 = vpop.xlane.xlu0 %943
        %v945 = vsel %vm825, %v937, -inf
        %946 = vmax.xlane.f32.xlu0 %v945
        %v947 = vpop.xlane.xlu0 %946
        %v948 = vsel %vm825, %v938, -inf
        %949 = vmax.xlane.f32.xlu0 %v948
        %v950 = vpop.xlane.xlu0 %949
        %v951 = vsub.f32 %v935, %v941
        %v952 = vsub.f32 %v936, %v944
        %v953 = vsub.f32 %v937, %v947
        %v954 = vsub.f32 %v938, %v950
        %v955 = vmul.f32 %v951, 1.442695
        %v956 = vpow.pop %v955
        %v957 = vmul.f32 %v952, 1.442695
        %v958 = vpow.pop %v957
        %v959 = vmul.f32 %v953, 1.442695
        %v960 = vpow.pop %v959
        %v961 = vmul.f32 %v954, 1.442695
        %v962 = vpow.pop %v961
        %v963 = vsel %vm825, %v956, 0.0
        %964 = vadd.xlane.f32.xlu0 %v963
        %v965 = vpop.xlane.xlu0 %964
        %v966 = vsel %vm825, %v958, 0.0
        %967 = vadd.xlane.f32.xlu0 %v966
        %v968 = vpop.xlane.xlu0 %967
        %v969 = vsel %vm825, %v960, 0.0
        %970 = vadd.xlane.f32.xlu0 %v969
        %v971 = vpop.xlane.xlu0 %970
        %v972 = vsel %vm825, %v962, 0.0
        %973 = vadd.xlane.f32.xlu0 %v972
        %v974 = vpop.xlane.xlu0 %973
        %v975 = vrcp.pop %v965
        %v976 = vmul.f32 %v956, %v975
        %v977 = vrcp.pop %v968
        %v978 = vmul.f32 %v958, %v977
        %v979 = vrcp.pop %v971
        %v980 = vmul.f32 %v960, %v979
        %v981 = vrcp.pop %v974
        %v982 = vmul.f32 %v962, %v981
        %983 = vst.msk [vmem:[#allocation2] sm:$0xff] %vm825, %v976
        %984 = vst.msk [vmem:[#allocation2 + $0x8] sm:$0xff] %vm825, %v978
        %985 = vst.msk [vmem:[#allocation2 + $0x10] sm:$0xff] %vm825, %v980
        %986 = vst.msk [vmem:[#allocation2 + $0x18] sm:$0xff] %vm825, %v982
      $region48: #{conv_attention_forward.1} parent=35 // pred_fallthru
        _
      // Predicated region
      $region49: #{conv_attention_forward.1} parent=35 // pred_check
        %p987 = pneg %p728
      $region50: #{conv_attention_forward.1} parent=35 // pred_check_branch
        %989 = sbr.rel (%p987) target = $region52
      $region51: #{conv_attention_forward.1} parent=35 // pred_region
        %v990 = vld [vmem:[%s345] sm:$0xff]
        %v991 = vld [vmem:[%s345 + $0x8] sm:$0xff]
        %v992 = vld [vmem:[%s345 + $0x10] sm:$0xff]
        %v993 = vld [vmem:[%s345 + $0x18] sm:$0xff]
        %v994 = vld [vmem:[%s345 + $0x20] sm:$0xff]
        %v995 = vld [vmem:[%s345 + $0x28] sm:$0xff]
        %v996 = vld [vmem:[%s345 + $0x30] sm:$0xff]
        %v997 = vld [vmem:[%s345 + $0x38] sm:$0xff]
        %v998 = vld [vmem:[%s336 + $0x20] sm:$0xff]
        %v999 = vld [vmem:[%s336 + $0x28] sm:$0xff]
        %v1000 = vld [vmem:[%s336 + $0x30] sm:$0xff]
        %v1001 = vld [vmem:[%s336 + $0x38] sm:$0xff]
        %v1002 = vld [vmem:[%s336 + $0x40] sm:$0xff]
        %v1003 = vld [vmem:[%s336 + $0x48] sm:$0xff]
        %v1004 = vld [vmem:[%s336 + $0x50] sm:$0xff]
        %v1005 = vld [vmem:[%s336 + $0x58] sm:$0xff]
        %vm1006 = vcmask 261120
        %v1008 = vsel %vm1006, %v998, 0
        %v1011 = vsel %vm1006, %v999, 0
        %v1014 = vsel %vm1006, %v1000, 0
        %v1017 = vsel %vm1006, %v1001, 0
        %v1020 = vsel %vm1006, %v1002, 0
        %v1023 = vsel %vm1006, %v1003, 0
        %v1026 = vsel %vm1006, %v1004, 0
        %v1029 = vsel %vm1006, %v1005, 0
        %1031 = vmatprep.subr.mxu0 %v991
        %1032 = vmatpush1.msra.mxu0 %v990
        %1033 = vmatprep.subr.mxu0 %v993
        %1034 = vmatpush1.msra.mxu0 %v992
        %1035 = vmatprep.subr.mxu0 %v995
        %1036 = vmatpush1.msra.mxu0 %v994
        %1037 = vmatprep.subr.mxu0 %v997
        %1038 = vmatpush1.msra.mxu0 %v996
        %1039 = vmatprep.subr.mxu0 0.0
        %1040 = vmatpush1.msra.mxu0 0.0
        %1041 = vmatprep.subr.mxu0 0.0
        %1042 = vmatpush1.msra.mxu0 0.0
        %1043 = vmatprep.subr.mxu0 0.0
        %1044 = vmatpush1.msra.mxu0 0.0
        %1045 = vmatprep.subr.mxu0 0.0
        %1046 = vmatpush1.msra.mxu0 0.0
        %1047 = vmatprep.subr.mxu0 0.0
        %1048 = vmatpush1.msra.mxu0 0.0
        %1049 = vmatprep.subr.mxu0 0.0
        %1050 = vmatpush1.msra.mxu0 0.0
        %1051 = vmatprep.subr.mxu0 0.0
        %1052 = vmatpush1.msra.mxu0 0.0
        %1053 = vmatprep.subr.mxu0 0.0
        %1054 = vmatpush1.msra.mxu0 0.0
        %1055 = vmatprep.subr.mxu0 0.0
        %1056 = vmatpush1.msra.mxu0 0.0
        %1057 = vmatprep.subr.mxu0 0.0
        %1058 = vmatpush1.msra.mxu0 0.0
        %1059 = vmatprep.subr.mxu0 0.0
        %1060 = vmatpush1.msra.mxu0 0.0
        %1061 = vmatprep.subr.mxu0 0.0
        %1062 = vmatpush1.msra.mxu0 0.0
        %1063 = vmatprep.subr.mxu0 0.0
        %1064 = vmatpush1.msra.mxu0 0.0
        %1065 = vmatprep.subr.mxu0 0.0
        %1066 = vmatpush1.msra.mxu0 0.0
        %1067 = vmatprep.subr.mxu0 0.0
        %1068 = vmatpush1.msra.mxu0 0.0
        %1069 = vmatprep.subr.mxu0 0.0
        %1070 = vmatpush1.msra.mxu0 0.0
        %1071 = vmatprep.subr.mxu0 0.0
        %1072 = vmatpush1.msra.mxu0 0.0
        %1073 = vmatprep.subr.mxu0 0.0
        %1074 = vmatpush1.msra.mxu0 0.0
        %1075 = vmatprep.subr.mxu0 0.0
        %1076 = vmatpush1.msra.mxu0 0.0
        %1077 = vmatprep.subr.mxu0 0.0
        %1078 = vmatpush1.msra.mxu0 0.0
        %1079 = vmatprep.subr.mxu0 0.0
        %1080 = vmatpush1.msra.mxu0 0.0
        %1081 = vmatprep.subr.mxu0 0.0
        %1082 = vmatpush1.msra.mxu0 0.0
        %1083 = vmatprep.subr.mxu0 0.0
        %1084 = vmatpush1.msra.mxu0 0.0
        %1085 = vmatprep.subr.mxu0 0.0
        %1086 = vmatpush1.msra.mxu0 0.0
        %1087 = vmatprep.subr.mxu0 0.0
        %1088 = vmatpush1.msra.mxu0 0.0
        %1089 = vmatprep.subr.mxu0 0.0
        %1090 = vmatpush1.msra.mxu0 0.0
        %1091 = vmatprep.subr.mxu0 0.0
        %1092 = vmatpush1.msra.mxu0 0.0
        %1093 = vmatprep.subr.mxu0 0.0
        %1094 = vmatpush1.msra.mxu0 0.0
        %1095 = vmatprep.mubr.f32.mxu0 0.0
        %1096 = vmatmul.mubr.f32.gmra.mrb[0].mxu0 %v1008
        %v1097 = vpop.f32.mrb[0].mxu0
        %v1098 = vadd.f32 0.0, %v1097
        %v1099 = vpop.f32.mrb[0].mxu0
        %v1100 = vadd.f32 0.0, %v1099
        %1101 = vmatprep.mubr.f32.mxu0 0.0
        %1102 = vmatmul.mubr.f32.gmra.mrb[0].mxu0 %v1011
        %v1103 = vpop.f32.mrb[0].mxu0
        %v1104 = vadd.f32 0.0, %v1103
        %v1105 = vpop.f32.mrb[0].mxu0
        %v1106 = vadd.f32 0.0, %v1105
        %1107 = vmatprep.mubr.f32.mxu0 0.0
        %1108 = vmatmul.mubr.f32.gmra.mrb[0].mxu0 %v1014
        %v1109 = vpop.f32.mrb[0].mxu0
        %v1110 = vadd.f32 0.0, %v1109
        %v1111 = vpop.f32.mrb[0].mxu0
        %v1112 = vadd.f32 0.0, %v1111
        %1113 = vmatprep.mubr.f32.mxu0 0.0
        %1114 = vmatmul.mubr.f32.gmra.mrb[0].mxu0 %v1017
        %v1115 = vpop.f32.mrb[0].mxu0
        %v1116 = vadd.f32 0.0, %v1115
        %v1117 = vpop.f32.mrb[0].mxu0
        %v1118 = vadd.f32 0.0, %v1117
        %1119 = vmatprep.mubr.f32.mxu0 0.0
        %1120 = vmatmul.mubr.f32.gmra.mrb[0].mxu0 %v1020
        %v1121 = vpop.f32.mrb[0].mxu0
        %v1122 = vadd.f32 0.0, %v1121
        %v1123 = vpop.f32.mrb[0].mxu0
        %v1124 = vadd.f32 0.0, %v1123
        %1125 = vmatprep.mubr.f32.mxu0 0.0
        %1126 = vmatmul.mubr.f32.gmra.mrb[0].mxu0 %v1023
        %v1127 = vpop.f32.mrb[0].mxu0
        %v1128 = vadd.f32 0.0, %v1127
        %v1129 = vpop.f32.mrb[0].mxu0
        %v1130 = vadd.f32 0.0, %v1129
        %1131 = vmatprep.mubr.f32.mxu0 0.0
        %1132 = vmatmul.mubr.f32.gmra.mrb[0].mxu0 %v1026
        %v1133 = vpop.f32.mrb[0].mxu0
        %v1134 = vadd.f32 0.0, %v1133
        %v1135 = vpop.f32.mrb[0].mxu0
        %v1136 = vadd.f32 0.0, %v1135
        %1137 = vmatprep.mubr.f32.mxu0 0.0
        %1138 = vmatmul.mubr.f32.gmra.mrb[0].mxu0 %v1029
        %v1139 = vpop.f32.mrb[0].mxu0
        %v1140 = vadd.f32 0.0, %v1139
        %v1141 = vpop.f32.mrb[0].mxu0
        %v1142 = vadd.f32 0.0, %v1141
        %1143 = vdwg.mxu0
        %v1144 = vld [vmem:[#allocation5] sm:$0xff]
        %v1145 = vld [vmem:[#allocation5 + $0x8] sm:$0xff]
        %v1146 = vld [vmem:[#allocation5 + $0x10] sm:$0xff]
        %v1147 = vld [vmem:[#allocation5 + $0x18] sm:$0xff]
        %1149 = vset.pattern.permute.xlu0 0
        %1150 = vperm.xlu0 %1149, %v1144
        %v1151 = vpop.permute.xlu0 %1150
        %1154 = vset.pattern.permute.xlu0 0
        %1155 = vperm.xlu0 %1154, %v1145
        %v1156 = vpop.permute.xlu0 %1155
        %1159 = vset.pattern.permute.xlu0 0
        %1160 = vperm.xlu0 %1159, %v1146
        %v1161 = vpop.permute.xlu0 %1160
        %1164 = vset.pattern.permute.xlu0 0
        %1165 = vperm.xlu0 %1164, %v1147
        %v1166 = vpop.permute.xlu0 %1165
        %v1168 = vmul.f32 %v1098, %v1151
        %v1169 = vmul.f32 %v1100, %v1151
        %v1170 = vmul.f32 %v1104, %v1156
        %v1171 = vmul.f32 %v1106, %v1156
        %v1172 = vmul.f32 %v1110, %v1161
        %v1173 = vmul.f32 %v1112, %v1161
        %v1174 = vmul.f32 %v1116, %v1166
        %v1175 = vmul.f32 %v1118, %v1166
        %1176 = vst [vmem:[%s371] sm:$0xff] %v1168
        %1177 = vst [vmem:[%s371 + $0x8] sm:$0xff] %v1169
        %1178 = vst [vmem:[%s371 + $0x10] sm:$0xff] %v1170
        %1179 = vst [vmem:[%s371 + $0x18] sm:$0xff] %v1171
        %1180 = vst [vmem:[%s371 + $0x20] sm:$0xff] %v1172
        %1181 = vst [vmem:[%s371 + $0x28] sm:$0xff] %v1173
        %1182 = vst [vmem:[%s371 + $0x30] sm:$0xff] %v1174
        %1183 = vst [vmem:[%s371 + $0x38] sm:$0xff] %v1175
        %1184 = vst [vmem:[%s385] sm:$0xff] %v1122
        %1185 = vst [vmem:[%s385 + $0x8] sm:$0xff] %v1124
        %1186 = vst [vmem:[%s385 + $0x10] sm:$0xff] %v1128
        %1187 = vst [vmem:[%s385 + $0x18] sm:$0xff] %v1130
        %1188 = vst [vmem:[%s385 + $0x20] sm:$0xff] %v1134
        %1189 = vst [vmem:[%s385 + $0x28] sm:$0xff] %v1136
        %1190 = vst [vmem:[%s385 + $0x30] sm:$0xff] %v1140
        %1191 = vst [vmem:[%s385 + $0x38] sm:$0xff] %v1142
        %v1192 = vld [vmem:[#allocation2] sm:$0xff]
        %v1193 = vld [vmem:[#allocation2 + $0x8] sm:$0xff]
        %v1194 = vld [vmem:[#allocation2 + $0x10] sm:$0xff]
        %v1195 = vld [vmem:[#allocation2 + $0x18] sm:$0xff]
        %v1197 = vsel %vm1006, %v1192, 0
        %v1200 = vsel %vm1006, %v1193, 0
        %v1203 = vsel %vm1006, %v1194, 0
        %v1206 = vsel %vm1006, %v1195, 0
        %1208 = vmatprep.subr.mxu0 %v1124
        %1209 = vmatpush1.msra.mxu0 %v1122
        %1210 = vmatprep.subr.mxu0 %v1130
        %1211 = vmatpush1.msra.mxu0 %v1128
        %1212 = vmatprep.subr.mxu0 %v1136
        %1213 = vmatpush1.msra.mxu0 %v1134
        %1214 = vmatprep.subr.mxu0 %v1142
        %1215 = vmatpush1.msra.mxu0 %v1140
        %1216 = vmatprep.subr.mxu0 0.0
        %1217 = vmatpush1.msra.mxu0 0.0
        %1218 = vmatprep.subr.mxu0 0.0
        %1219 = vmatpush1.msra.mxu0 0.0
        %1220 = vmatprep.subr.mxu0 0.0
        %1221 = vmatpush1.msra.mxu0 0.0
        %1222 = vmatprep.subr.mxu0 0.0
        %1223 = vmatpush1.msra.mxu0 0.0
        %1224 = vmatprep.subr.mxu0 0.0
        %1225 = vmatpush1.msra.mxu0 0.0
        %1226 = vmatprep.subr.mxu0 0.0
        %1227 = vmatpush1.msra.mxu0 0.0
        %1228 = vmatprep.subr.mxu0 0.0
        %1229 = vmatpush1.msra.mxu0 0.0
        %1230 = vmatprep.subr.mxu0 0.0
        %1231 = vmatpush1.msra.mxu0 0.0
        %1232 = vmatprep.subr.mxu0 0.0
        %1233 = vmatpush1.msra.mxu0 0.0
        %1234 = vmatprep.subr.mxu0 0.0
        %1235 = vmatpush1.msra.mxu0 0.0
        %1236 = vmatprep.subr.mxu0 0.0
        %1237 = vmatpush1.msra.mxu0 0.0
        %1238 = vmatprep.subr.mxu0 0.0
        %1239 = vmatpush1.msra.mxu0 0.0
        %1240 = vmatprep.subr.mxu0 0.0
        %1241 = vmatpush1.msra.mxu0 0.0
        %1242 = vmatprep.subr.mxu0 0.0
        %1243 = vmatpush1.msra.mxu0 0.0
        %1244 = vmatprep.subr.mxu0 0.0
        %1245 = vmatpush1.msra.mxu0 0.0
        %1246 = vmatprep.subr.mxu0 0.0
        %1247 = vmatpush1.msra.mxu0 0.0
        %1248 = vmatprep.subr.mxu0 0.0
        %1249 = vmatpush1.msra.mxu0 0.0
        %1250 = vmatprep.subr.mxu0 0.0
        %1251 = vmatpush1.msra.mxu0 0.0
        %1252 = vmatprep.subr.mxu0 0.0
        %1253 = vmatpush1.msra.mxu0 0.0
        %1254 = vmatprep.subr.mxu0 0.0
        %1255 = vmatpush1.msra.mxu0 0.0
        %1256 = vmatprep.subr.mxu0 0.0
        %1257 = vmatpush1.msra.mxu0 0.0
        %1258 = vmatprep.subr.mxu0 0.0
        %1259 = vmatpush1.msra.mxu0 0.0
        %1260 = vmatprep.subr.mxu0 0.0
        %1261 = vmatpush1.msra.mxu0 0.0
        %1262 = vmatprep.subr.mxu0 0.0
        %1263 = vmatpush1.msra.mxu0 0.0
        %1264 = vmatprep.subr.mxu0 0.0
        %1265 = vmatpush1.msra.mxu0 0.0
        %1266 = vmatprep.subr.mxu0 0.0
        %1267 = vmatpush1.msra.mxu0 0.0
        %1268 = vmatprep.subr.mxu0 0.0
        %1269 = vmatpush1.msra.mxu0 0.0
        %1270 = vmatprep.subr.mxu0 0.0
        %1271 = vmatpush1.msra.mxu0 0.0
        %1272 = vmatprep.mubr.f32.mxu0 0.0
        %1273 = vmatmul.mubr.f32.gmra.mrb[0].mxu0 %v1197
        %v1274 = vpop.f32.mrb[0].mxu0
        %v1275 = vadd.f32 0.0, %v1274
        %v1276 = vpop.f32.mrb[0].mxu0
        %v1277 = vadd.f32 0.0, %v1276
        %1278 = vmatprep.mubr.f32.mxu0 0.0
        %1279 = vmatmul.mubr.f32.gmra.mrb[0].mxu0 %v1200
        %v1280 = vpop.f32.mrb[0].mxu0
        %v1281 = vadd.f32 0.0, %v1280
        %v1282 = vpop.f32.mrb[0].mxu0
        %v1283 = vadd.f32 0.0, %v1282
        %1284 = vmatprep.mubr.f32.mxu0 0.0
        %1285 = vmatmul.mubr.f32.gmra.mrb[0].mxu0 %v1203
        %v1286 = vpop.f32.mrb[0].mxu0
        %v1287 = vadd.f32 0.0, %v1286
        %v1288 = vpop.f32.mrb[0].mxu0
        %v1289 = vadd.f32 0.0, %v1288
        %1290 = vmatprep.mubr.f32.mxu0 0.0
        %1291 = vmatmul.mubr.f32.gmra.mrb[0].mxu0 %v1206
        %v1292 = vpop.f32.mrb[0].mxu0
        %v1293 = vadd.f32 0.0, %v1292
        %v1294 = vpop.f32.mrb[0].mxu0
        %v1295 = vadd.f32 0.0, %v1294
        %1296 = vdwg.mxu0
        %1297 = vst [vmem:[%s357] sm:$0xff] %v1275
        %1298 = vst [vmem:[%s357 + $0x8] sm:$0xff] %v1277
        %1299 = vst [vmem:[%s357 + $0x10] sm:$0xff] %v1281
        %1300 = vst [vmem:[%s357 + $0x18] sm:$0xff] %v1283
        %1301 = vst [vmem:[%s357 + $0x20] sm:$0xff] %v1287
        %1302 = vst [vmem:[%s357 + $0x28] sm:$0xff] %v1289
        %1303 = vst [vmem:[%s357 + $0x30] sm:$0xff] %v1293
        %1304 = vst [vmem:[%s357 + $0x38] sm:$0xff] %v1295
      $region52: #{conv_attention_forward.1} parent=35 // pred_fallthru
        _
      %s1305 = smul.u32 %s24, %s25
      %s1306 = smul.u32 4, %s23
      %s1307 = smul.u32 2, %s1305
      %p1308 = scmp.lt.s32.totalorder %s1306, 7
      %s1309 = scalar_select %p1308, %s1306, 7
      %p1310 = scmp.lt.s32.totalorder %s1307, 1
      %s1311 = scalar_select %p1310, %s1307, 1
      %s1312 = smul.addr %s1309, 2
      %s1313 = sadd.s32 %s1311, %s1312
      %s1314 = smul.addr %s1313, 8
      %s1315 = scalar_lea.vmem %s4, %s1314
      %s1316 = smul.u32 %s24, %s25
      %s1317 = smul.u32 4, %s23
      %s1318 = smul.u32 2, %s1316
      %p1319 = scmp.lt.s32.totalorder %s1317, 7
      %s1320 = scalar_select %p1319, %s1317, 7
      %p1321 = scmp.lt.s32.totalorder %s1318, 1
      %s1322 = scalar_select %p1321, %s1318, 1
      %s1323 = smul.addr %s1320, 2
      %s1324 = sadd.s32 %s1322, %s1323
      %s1325 = smul.addr %s1324, 8
      %s1326 = scalar_lea.vmem %s5, %s1325
      %s1327 = smul.u32 %s24, %s25
      %s1328 = smul.u32 4, %s23
      %s1329 = smul.u32 2, %s1327
      %p1330 = scmp.lt.s32.totalorder %s1328, 7
      %s1331 = scalar_select %p1330, %s1328, 7
      %p1332 = scmp.lt.s32.totalorder %s1329, 1
      %s1333 = scalar_select %p1332, %s1329, 1
      %s1334 = smul.addr %s1331, 2
      %s1335 = sadd.s32 %s1333, %s1334
      %s1336 = smul.addr %s1335, 8
      %s1337 = scalar_lea.vmem %s6, %s1336
      // Predicated region
      $region53: #{conv_attention_forward.1} parent=35 // pred_check
        %p1338 = pneg %p155
      $region54: #{conv_attention_forward.1} parent=35 // pred_check_branch
        %1340 = sbr.rel (%p1338) target = $region56
      $region55: #{conv_attention_forward.1} parent=35 // pred_region
        %s1341 = smul.u32 %s24, %s25
        %s1342 = smul.u32 4, %s23
        %s1343 = smul.u32 2, %s1341
      $region56: #{conv_attention_forward.1} parent=35 // pred_fallthru
        _
      // Predicated region
      $region57: #{conv_attention_forward.1} parent=35 // pred_check
        %p1344 = pneg %p185
      $region58: #{conv_attention_forward.1} parent=35 // pred_check_branch
        %1346 = sbr.rel (%p1344) target = $region60
      $region59: #{conv_attention_forward.1} parent=35 // pred_region
        %s1347 = smul.u32 %s24, %s25
        %s1348 = smul.u32 4, %s23
        %s1349 = smul.u32 2, %s1347
      $region60: #{conv_attention_forward.1} parent=35 // pred_fallthru
        _
      // Predicated region
      $region61: #{conv_attention_forward.1} parent=35 // pred_check
        %p1350 = pneg %p215
      $region62: #{conv_attention_forward.1} parent=35 // pred_check_branch
        %1352 = sbr.rel (%p1350) target = $region64
      $region63: #{conv_attention_forward.1} parent=35 // pred_region
        %s1353 = smul.u32 %s24, %s25
        %s1354 = smul.u32 4, %s23
        %s1355 = smul.u32 2, %s1353
      $region64: #{conv_attention_forward.1} parent=35 // pred_fallthru
        _
    $region36: #{conv_attention_forward.1} parent=5 // pred_fallthru
      _
    %p1356 = scmp.le.s32.totalorder 2, %s13
    // Predicated region
    $region65: #{conv_attention_forward.1} parent=5 // pred_check
      %p1357 = pneg %p1356
    $region66: #{conv_attention_forward.1} parent=5 // pred_check_branch
      %1359 = sbr.rel (%p1357) target = $region68
    $region67: #{conv_attention_forward.1} parent=5 // pred_region
      %s1360 = ssub.s32 %s13, 2
      // Predicated region
      $region69: #{conv_attention_forward.1} parent=67 // pred_check
        %p1361 = pneg %p161
      $region70: #{conv_attention_forward.1} parent=67 // pred_check_branch
        %1363 = sbr.rel (%p1361) target = $region72
      $region71: #{conv_attention_forward.1} parent=67 // pred_region
        %s1364 = smul.u32 %s27, %s28
        %s1365 = smul.u32 4, %s26
        %s1366 = smul.u32 2, %s1364
        %p1367 = scmp.lt.s32.totalorder %s1365, 7
        %s1368 = scalar_select %p1367, %s1365, 7
        %p1369 = scmp.lt.s32.totalorder %s1366, 1
        %s1370 = scalar_select %p1369, %s1366, 1
        %s1371 = smul.addr %s1368, 2
        %s1372 = sadd.s32 %s1370, %s1371
        %s1373 = smul.addr %s1372, 8
        %s1374 = scalar_lea.vmem %s4, %s1373
      $region72: #{conv_attention_forward.1} parent=67 // pred_fallthru
        _
      // Predicated region
      $region73: #{conv_attention_forward.1} parent=67 // pred_check
        %p1375 = pneg %p191
      $region74: #{conv_attention_forward.1} parent=67 // pred_check_branch
        %1377 = sbr.rel (%p1375) target = $region76
      $region75: #{conv_attention_forward.1} parent=67 // pred_region
        %s1378 = smul.u32 %s27, %s28
        %s1379 = smul.u32 4, %s26
        %s1380 = smul.u32 2, %s1378
        %p1381 = scmp.lt.s32.totalorder %s1379, 7
        %s1382 = scalar_select %p1381, %s1379, 7
        %p1383 = scmp.lt.s32.totalorder %s1380, 1
        %s1384 = scalar_select %p1383, %s1380, 1
        %s1385 = smul.addr %s1382, 2
        %s1386 = sadd.s32 %s1384, %s1385
        %s1387 = smul.addr %s1386, 8
        %s1388 = scalar_lea.vmem %s5, %s1387
      $region76: #{conv_attention_forward.1} parent=67 // pred_fallthru
        _
      // Predicated region
      $region77: #{conv_attention_forward.1} parent=67 // pred_check
        %p1389 = pneg %p221
      $region78: #{conv_attention_forward.1} parent=67 // pred_check_branch
        %1391 = sbr.rel (%p1389) target = $region80
      $region79: #{conv_attention_forward.1} parent=67 // pred_region
        %s1392 = smul.u32 %s27, %s28
        %s1393 = smul.u32 4, %s26
        %s1394 = smul.u32 2, %s1392
        %p1395 = scmp.lt.s32.totalorder %s1393, 7
        %s1396 = scalar_select %p1395, %s1393, 7
        %p1397 = scmp.lt.s32.totalorder %s1394, 1
        %s1398 = scalar_select %p1397, %s1394, 1
        %s1399 = smul.addr %s1396, 2
        %s1400 = sadd.s32 %s1398, %s1399
        %s1401 = smul.addr %s1400, 8
        %s1402 = scalar_lea.vmem %s6, %s1401
      $region80: #{conv_attention_forward.1} parent=67 // pred_fallthru
        _
    $region68: #{conv_attention_forward.1} parent=5 // pred_fallthru
      _
  $region6: #{conv_attention_forward.1} parent=0 // loop_footer
    %s17 = sadd.s32 1, %s13
  $region7: #{conv_attention_forward.1} parent=0 // loop_footer_branch
    %12 = sbr.rel target = $region3
  $region8: #{conv_attention_forward.1} parent=0 // loop_exit
    _

</llo_original>
